<compile_context>
chip_gen: v7x
topology: tpu7x:2x2x1
jax: 0.10.0
libtpu: 0.0.40
codegen_flags: <defaults>
</compile_context>

<pallas_src>
import functools
import math

import jax
import jax.numpy as jnp
from jax.experimental import pallas as pl
from jax.experimental.pallas import tpu as pltpu

LN_EPS = 1e-12                      # BERT layer_norm_eps
_INV_SQRT2 = 1.0 / math.sqrt(2.0)


# --------------------------------------------------------------------------------------
# shared math helpers (used inside kernels and in the pure-JAX reference)
# --------------------------------------------------------------------------------------
def _gelu_exact(x):
    # exact (erf) GELU, matching torch.nn.functional.gelu default
    # TODO(synk): on v5e a tanh-approx GELU would move this work from VALU to EUP.
    return 0.5 * x * (1.0 + jax.lax.erf(x * _INV_SQRT2))


def _layernorm(y, gamma, beta):
    mean = jnp.mean(y, axis=-1, keepdims=True)
    var = jnp.mean(jnp.square(y - mean), axis=-1, keepdims=True)
    return (y - mean) * jax.lax.rsqrt(var + LN_EPS) * gamma + beta


def _pick_block_m(m, cap, mult=8):
    """Largest M-tile <= cap dividing m, sublane aligned, with >=2 grid steps if possible."""
    cap = max(1, min(cap, m))
    if m >= 2 * mult:
        cap = min(cap, m // 2)          # keep >=2 grid steps so both v7x TCs get work
    for cand in range(cap, 0, -1):
        if m % cand == 0 and (cand % mult == 0 or cand == m):
            return cand
    return m


def _pick_head_block(n_heads, d_head):
    """Smallest head-block whose merged output slab (hb*D) is lane-dense (mult of 128)."""
    for hb in range(1, n_heads + 1):
        if n_heads % hb == 0 and (hb * d_head) % 128 == 0:
            return hb
    return n_heads                      # fall back: hb*D == H (full array dim, always legal)


def _pick_block_i(i_dim, cap):
    """Largest lane-dense divisor of the MLP intermediate dim <= cap."""
    cap = max(1, min(cap, i_dim))
    for cand in range(cap, 0, -1):
        if i_dim % cand == 0 and cand % 128 == 0:
            return cand
    return i_dim


_VMEM_CAP_CACHE = None


def _vmem_cap_bytes():
    """~82% of physical VMEM: ~105 MiB on v5e/v6e (128 MiB), ~52 MiB on v7x (64 MiB)."""
    global _VMEM_CAP_CACHE
    if _VMEM_CAP_CACHE is None:
        try:
            phys = int(pltpu.get_tpu_info().vmem_capacity_bytes)
        except Exception:
            phys = 128 * 1024 * 1024
        _VMEM_CAP_CACHE = max(32 * 1024 * 1024, int(phys * 0.82))
    return _VMEM_CAP_CACHE


def _compiler_params(dim_semantics, vmem_est_bytes):
    cap = _vmem_cap_bytes()
    vmem_limit = int(min(max(2 * vmem_est_bytes, 32 * 1024 * 1024), cap))
    return pltpu.CompilerParams(
        dimension_semantics=tuple(dim_semantics),
        vmem_limit_bytes=vmem_limit,
    )


# --------------------------------------------------------------------------------------
# kernels
# --------------------------------------------------------------------------------------
def _fused_attn_kernel(x_ref, wq_ref, wk_ref, wv_ref, bq_ref, bk_ref, bv_ref,
                       m_ref, o_ref, *, scale, hb, d):
    """QKV projection + softmax attention for `hb` heads of one batch element."""
    x = x_ref[0, :, :]                               # [S, H] native dtype (resident per batch)
    xw = x.astype(wq_ref.dtype)                      # matmul operand in weight dtype
    q = jnp.dot(xw, wq_ref[...], preferred_element_type=jnp.float32) \
        + bq_ref[...].astype(jnp.float32)            # [S, hb*D] f32
    k = jnp.dot(xw, wk_ref[...], preferred_element_type=jnp.float32) \
        + bk_ref[...].astype(jnp.float32)
    v = jnp.dot(xw, wv_ref[...], preferred_element_type=jnp.float32) \
        + bv_ref[...].astype(jnp.float32)
    m = m_ref[0, :, :].astype(jnp.float32)           # additive mask [1,S] (or [S,S])

    outs = []
    for h in range(hb):                              # static unroll over heads in the block
        sl = slice(h * d, (h + 1) * d)
        qh, kh, vh = q[:, sl], k[:, sl], v[:, sl]
        # scores = q @ k^T * scale + mask   (contract on D without materializing k^T)
        s = jax.lax.dot_general(qh, kh, (((1,), (1,)), ((), ())),
                                preferred_element_type=jnp.float32) * scale + m
        s = s - jnp.max(s, axis=-1, keepdims=True)
        p = jnp.exp(s)
        l = jnp.sum(p, axis=-1, keepdims=True)
        # TODO(synk): attention_dropout not applied (eval mode -> identity).
        ctx = jnp.dot(p.astype(x_ref.dtype), vh.astype(x_ref.dtype),
                      preferred_element_type=jnp.float32)
        outs.append(ctx * (1.0 / l))                 # normalize after PV: S divides, not S*S
    # single lane-dense store of the merged heads slab [S, hb*D]
    o_ref[0, :, :] = jnp.concatenate(outs, axis=-1).astype(o_ref.dtype)


def _dense_res_ln_kernel(x_ref, res_ref, w_ref, b_ref, g_ref, beta_ref, o_ref):
    b = b_ref[...].astype(jnp.float32)               # hoisted once per tile
    g = g_ref[...].astype(jnp.float32)
    beta = beta_ref[...].astype(jnp.float32)
    y = jnp.dot(x_ref[...].astype(w_ref.dtype), w_ref[...],
                preferred_element_type=jnp.float32) + b
    # TODO(synk): hidden dropout (dropout(y + bias)) not applied (eval mode -> identity).
    y = y + res_ref[...].astype(jnp.float32)
    o_ref[...] = _layernorm(y, g, beta).astype(o_ref.dtype)


def _mlp_res_ln_kernel(x_ref, w1_ref, b1_ref, w2_ref, b2_ref, g_ref, beta_ref,
                       o_ref, acc_ref):
    """K-tiled MLP: per I-tile GELU(x@W1+b1) @ W2 accumulated in f32; LN on last tile."""
    it = pl.program_id(1)

    @pl.when(it == 0)
    def _():
        acc_ref[...] = jnp.zeros_like(acc_ref)

    xw = x_ref[...].astype(w1_ref.dtype)
    h = jnp.dot(xw, w1_ref[...], preferred_element_type=jnp.float32) \
        + b1_ref[...].astype(jnp.float32)            # [TM, TI] f32
    h = _gelu_exact(h)
    acc_ref[...] += jnp.dot(h.astype(w2_ref.dtype), w2_ref[...],
                            preferred_element_type=jnp.float32)

    @pl.when(it == pl.num_programs(1) - 1)
    def _():
        # TODO(synk): hidden dropout (dropout(z + bias)) not applied (eval mode -> identity).
        y = acc_ref[...] + b2_ref[...].astype(jnp.float32) + x_ref[...].astype(jnp.float32)
        o_ref[...] = _layernorm(y, g_ref[...].astype(jnp.float32),
                                beta_ref[...].astype(jnp.float32)).astype(o_ref.dtype)


# --------------------------------------------------------------------------------------
# pallas_call wrappers
# --------------------------------------------------------------------------------------
def _fused_attention(x, wq, wk, wv, bq, bk, bv, mask, n_heads):
    """x:[B,S,H], per-projection weights [H,H]/[H]; mask additive [B,1,S] or [B,S,S].
    Returns head-merged context [B,S,H] (same column layout as the reference merge)."""
    B, S, H = x.shape
    D = H // n_heads
    hb = _pick_head_block(n_heads, D)
    nHB = n_heads // hb
    hbD = hb * D
    mq = mask.shape[1]
    scale = 1.0 / math.sqrt(D)
    kernel = functools.partial(_fused_attn_kernel, scale=scale, hb=hb, d=D)

    itm = x.dtype.itemsize
    witm = wq.dtype.itemsize
    cost = pl.CostEstimate(
        flops=int(6 * B * S * H * H + 4 * B * n_heads * S * S * D),
        transcendentals=int(B * n_heads * S * S),
        bytes_accessed=int(2 * B * S * H * itm + (3 * H * H + 3 * H) * witm
                           + B * mq * S * 4),
    )
    vmem_est = 4 * (2 * (S * H + 3 * H * hbD + mq * S + S * hbD)
                    + 3 * S * hbD + 2 * S * S)

    w_spec = pl.BlockSpec((H, hbD), lambda b, h: (0, h))
    b_spec = pl.BlockSpec((1, hbD), lambda b, h: (0, h))
    return pl.pallas_call(
        kernel,
        out_shape=jax.ShapeDtypeStruct((B, S, H), x.dtype),
        grid=(B, nHB),                                   # head-block innermost: x stays resident
        in_specs=[
            pl.BlockSpec((1, S, H), lambda b, h: (b, 0, 0)),
            w_spec, w_spec, w_spec,
            b_spec, b_spec, b_spec,
            pl.BlockSpec((1, mq, S), lambda b, h: (b, 0, 0)),
        ],
        out_specs=pl.BlockSpec((1, S, hbD), lambda b, h: (b, 0, h)),   # lane-dense slab
        compiler_params=_compiler_params(("parallel", "parallel"), vmem_est),
        cost_estimate=cost,
    )(x, wq, wk, wv, bq.reshape(1, H), bk.reshape(1, H), bv.reshape(1, H), mask)


def _dense_residual_layernorm(x2d, res2d, w, b, g, beta, *, block_m):
    M, H = x2d.shape
    mult = 16 if x2d.dtype == jnp.bfloat16 else 8
    tm = _pick_block_m(M, block_m, mult)
    itm = x2d.dtype.itemsize
    cost = pl.CostEstimate(
        flops=int(2 * M * H * H + 10 * M * H),
        transcendentals=int(M),
        bytes_accessed=int(3 * M * H * itm + (H * H + 3 * H) * w.dtype.itemsize),
    )
    vmem_est = (6 * tm * H + 2 * (H * H + 3 * H)) * 4
    return pl.pallas_call(
        _dense_res_ln_kernel,
        out_shape=jax.ShapeDtypeStruct((M, H), x2d.dtype),
        grid=(M // tm,),
        in_specs=[
            pl.BlockSpec((tm, H), lambda i: (i, 0)),
            pl.BlockSpec((tm, H), lambda i: (i, 0)),
            pl.BlockSpec((H, H), lambda i: (0, 0)),      # resident across grid steps
            pl.BlockSpec((1, H), lambda i: (0, 0)),
            pl.BlockSpec((1, H), lambda i: (0, 0)),
            pl.BlockSpec((1, H), lambda i: (0, 0)),
        ],
        out_specs=pl.BlockSpec((tm, H), lambda i: (i, 0)),
        compiler_params=_compiler_params(("parallel",), vmem_est),
        cost_estimate=cost,
    )(x2d, res2d, w, b.reshape(1, H), g.reshape(1, H), beta.reshape(1, H))


def _mlp_residual_layernorm(x2d, w1, b1, w2, b2, g, beta, *, block_m, block_i):
    M, H = x2d.shape
    I = w1.shape[1]
    mult = 16 if x2d.dtype == jnp.bfloat16 else 8
    tm = _pick_block_m(M, block_m, mult)
    ti = _pick_block_i(I, block_i)
    itm = x2d.dtype.itemsize
    witm = w1.dtype.itemsize
    cost = pl.CostEstimate(
        flops=int(4 * M * H * I + 10 * M * H),
        transcendentals=int(M * I),
        bytes_accessed=int(2 * M * H * itm + (2 * H * I + I + 3 * H) * witm),
    )
    vmem_est = (2 * (tm * H + 2 * H * ti + ti + 3 * H + tm * H) + tm * ti + tm * H) * 4
    return pl.pallas_call(
        _mlp_res_ln_kernel,
        out_shape=jax.ShapeDtypeStruct((M, H), x2d.dtype),
        grid=(M // tm, I // ti),                         # reduction (I) axis last
        in_specs=[
            pl.BlockSpec((tm, H), lambda i, k: (i, 0)),  # resident across the I axis
            pl.BlockSpec((H, ti), lambda i, k: (0, k)),
            pl.BlockSpec((1, ti), lambda i, k: (0, k)),
            pl.BlockSpec((ti, H), lambda i, k: (k, 0)),
            pl.BlockSpec((1, H), lambda i, k: (0, 0)),
            pl.BlockSpec((1, H), lambda i, k: (0, 0)),
            pl.BlockSpec((1, H), lambda i, k: (0, 0)),
        ],
        out_specs=pl.BlockSpec((tm, H), lambda i, k: (i, 0)),
        scratch_shapes=[pltpu.VMEM((tm, H), jnp.float32)],
        compiler_params=_compiler_params(("parallel", "arbitrary"), vmem_est),
        cost_estimate=cost,
    )(x2d, w1, b1.reshape(1, I), w2, b2.reshape(1, H), g.reshape(1, H), beta.reshape(1, H))


# --------------------------------------------------------------------------------------
# full BertLayer_tp forward (eval mode)
# --------------------------------------------------------------------------------------
def bert_layer_tp(x, attention_mask, params, *, block_m=256, block_i=1024,
                  weights_dtype=None):
    """x: [B, S, H]; attention_mask: additive key mask [B,S] / [B,1,S], full [B,S,S], or None.

    The torch module permutes [B,S,H]->[S,B,H] and back around the Megatron blocks;
    that round-trip is purely a layout change, so we compute directly in [B, S, H].
    `weights_dtype=jnp.bfloat16` pre-casts matmul weights (accumulation stays f32).
    """
    B, S, H = x.shape
    nH = params["num_heads"]
    M = B * S

    wqkv, wo, w1, w2 = params["wqkv"], params["wo"], params["w1"], params["w2"]
    if weights_dtype is not None:
        wqkv, wo, w1, w2 = (w.astype(weights_dtype) for w in (wqkv, wo, w1, w2))
    wq, wk, wv = jnp.split(wqkv, 3, axis=1)
    bq, bk, bv = jnp.split(params["bqkv"], 3, axis=0)

    # normalize additive mask to [B, mq, S] (key-padding mq=1, or full mq=S)
    if attention_mask is None:
        mask = jnp.zeros((B, 1, S), dtype=jnp.float32)
    elif attention_mask.ndim == 2:
        mask = attention_mask.reshape(B, 1, S).astype(jnp.float32)
    else:
        mask = attention_mask.astype(jnp.float32)

    # --- BertAttention_tp ---------------------------------------------------------------
    ctx = _fused_attention(x, wq, wk, wv, bq, bk, bv, mask, nH)         # [B,S,H], heads merged
    x2d = x.reshape(M, H)
    ctx2d = ctx.reshape(M, H)                                           # free reshape, no transpose
    y2d = _dense_residual_layernorm(ctx2d, x2d, wo, params["bo"],
                                    params["ln1_g"], params["ln1_b"], block_m=block_m)

    # --- BertMLP_tp ----------------------------------------------------------------------
    out2d = _mlp_residual_layernorm(y2d, w1, params["b1"], w2, params["b2"],
                                    params["ln2_g"], params["ln2_b"],
                                    block_m=block_m, block_i=block_i)
    return out2d.reshape(B, S, H)


# --------------------------------------------------------------------------------------
# pure-JAX reference
# --------------------------------------------------------------------------------------
def _reference_layer(x, mask, p):
    """mask: additive [B, mq, S] with mq in {1, S}."""
    f32 = jnp.float32
    B, S, H = x.shape
    nH = p["num_heads"]
    D = H // nH
    xf = x.astype(f32)

    qkv = xf @ p["wqkv"].astype(f32) + p["bqkv"].astype(f32)
    q, k, v = jnp.split(qkv, 3, axis=-1)

    def heads(t):
        return t.reshape(B, S, nH, D).transpose(0, 2, 1, 3)

    qh, kh, vh = heads(q), heads(k), heads(v)
    s = jnp.einsum("bhqd,bhkd->bhqk", qh, kh) * (1.0 / math.sqrt(D))
    s = s + mask[:, None, :, :].astype(f32)
    a = jax.nn.softmax(s, axis=-1)
    ctx = jnp.einsum("bhqk,bhkd->bhqd", a, vh).transpose(0, 2, 1, 3).reshape(B, S, H)

    attn = ctx @ p["wo"].astype(f32) + p["bo"].astype(f32)
    y = _layernorm(attn + xf, p["ln1_g"].astype(f32), p["ln1_b"].astype(f32))

    h = jax.nn.gelu(y @ p["w1"].astype(f32) + p["b1"].astype(f32), approximate=False)
    z = h @ p["w2"].astype(f32) + p["b2"].astype(f32)
    return _layernorm(z + y, p["ln2_g"].astype(f32), p["ln2_b"].astype(f32))


# --------------------------------------------------------------------------------------
if __name__ == "__main__":
    B, S, H, nH = 2, 64, 128, 2          # lane-dense (H multiple of 128), fast to run
    I = 4 * H                            # Megatron ffn_hidden_size = 4 * hidden_size
    num_layers = 2
    init_std = 0.02

    key = jax.random.PRNGKey(0)
    ks = jax.random.split(key, 12)

    x = jax.random.normal(ks[0], (B, S, H), dtype=jnp.float32)

    # additive key-padding mask: batch 1 has its last 16 key positions masked out
    valid = jnp.array([S, S - 16], dtype=jnp.int32)
    key_pos = jnp.arange(S)[None, :]
    mask_1d = jnp.where(key_pos < valid[:, None], 0.0, -10000.0).astype(jnp.float32)   # [B, S]

    params = {
        "num_heads": nH,
        "wqkv": init_std * jax.random.normal(ks[1], (H, 3 * H), jnp.float32),
        "bqkv": 0.01 * jax.random.normal(ks[2], (3 * H,), jnp.float32),
        "wo": (init_std / math.sqrt(2.0 * num_layers))
              * jax.random.normal(ks[3], (H, H), jnp.float32),
        "bo": 0.01 * jax.random.normal(ks[4], (H,), jnp.float32),
        "ln1_g": 1.0 + 0.01 * jax.random.normal(ks[5], (H,), jnp.float32),
        "ln1_b": 0.01 * jax.random.normal(ks[6], (H,), jnp.float32),
        "w1": init_std * jax.random.normal(ks[7], (H, I), jnp.float32),
        "b1": 0.01 * jax.random.normal(ks[8], (I,), jnp.float32),
        "w2": (init_std / math.sqrt(2.0 * num_layers))
              * jax.random.normal(ks[9], (I, H), jnp.float32),
        "b2": 0.01 * jax.random.normal(ks[10], (H,), jnp.float32),
        "ln2_g": 1.0 + 0.01 * jax.random.normal(ks[11], (H,), jnp.float32),
        "ln2_b": jnp.zeros((H,), jnp.float32),
    }

    # block_m=64 -> 2 pipelined M-tiles per dense kernel; block_i=256 -> 2 K-tiles in the MLP
    out = bert_layer_tp(x, mask_1d, params, block_m=64, block_i=256)
    jax.block_until_ready(out)

    ref = _reference_layer(x, mask_1d.reshape(B, 1, S), params)
    assert out.shape == (B, S, H)
    err = float(jnp.max(jnp.abs(out - ref)))
    assert jnp.allclose(out, ref, atol=2e-4, rtol=2e-4), f"mismatch vs reference: {err}"

    print("KERNEL_OK")
</pallas_src>

<mosaic_0001>
module attributes {stable_mosaic.version = 11 : i64} {
  func.func @_fused_attn_kernel(%arg0: i32, %arg1: i32, %arg2: memref<1x64x128xf32, #tpu.memory_space<vmem>>, %arg3: memref<128x128xf32, #tpu.memory_space<vmem>>, %arg4: memref<128x128xf32, #tpu.memory_space<vmem>>, %arg5: memref<128x128xf32, #tpu.memory_space<vmem>>, %arg6: memref<1x128xf32, #tpu.memory_space<vmem>>, %arg7: memref<1x128xf32, #tpu.memory_space<vmem>>, %arg8: memref<1x128xf32, #tpu.memory_space<vmem>>, %arg9: memref<1x1x64xf32, #tpu.memory_space<vmem>>, %arg10: memref<1x64x128xf32, #tpu.memory_space<vmem>>) attributes {dimension_semantics = [#tpu.dimension_semantics<parallel>, #tpu.dimension_semantics<parallel>], iteration_bounds = array<i64: 2, 1>, scalar_prefetch = 0 : i64, scratch_operands = 0 : i64, tpu.core_type = #tpu.core_type<tc>, window_params = [{transform_indices = @transform_0, window_bounds = array<i64: 1, 64, 128>}, {transform_indices = @transform_1, window_bounds = array<i64: 128, 128>}, {transform_indices = @transform_2, window_bounds = array<i64: 128, 128>}, {transform_indices = @transform_3, window_bounds = array<i64: 128, 128>}, {transform_indices = @transform_4, window_bounds = array<i64: 1, 128>}, {transform_indices = @transform_5, window_bounds = array<i64: 1, 128>}, {transform_indices = @transform_6, window_bounds = array<i64: 1, 128>}, {transform_indices = @transform_7, window_bounds = array<i64: 1, 1, 64>}, {transform_indices = @transform_8, window_bounds = array<i64: 1, 64, 128>}]} {
    %c0 = arith.constant 0 : index
    %c0_0 = arith.constant 0 : index
    %c0_1 = arith.constant 0 : index
    %0 = vector.load %arg2[%c0, %c0_0, %c0_1] : memref<1x64x128xf32, #tpu.memory_space<vmem>>, vector<1x64x128xf32>
    %1 = vector.shape_cast %0 : vector<1x64x128xf32> to vector<64x128xf32>
    %c0_2 = arith.constant 0 : index
    %c0_3 = arith.constant 0 : index
    %2 = vector.load %arg3[%c0_2, %c0_3] : memref<128x128xf32, #tpu.memory_space<vmem>>, vector<128x128xf32>
    %cst = arith.constant dense<0.000000e+00> : vector<64x128xf32>
    %3 = tpu.matmul %1, %2, %cst {dimension_numbers = #tpu.dot_dimension_numbers<[1], [0], [0], [1], [0, 0, 1, 1], [], []>} : vector<64x128xf32>, vector<128x128xf32>, vector<64x128xf32> -> vector<64x128xf32>
    %c0_4 = arith.constant 0 : index
    %c0_5 = arith.constant 0 : index
    %4 = vector.load %arg6[%c0_4, %c0_5] : memref<1x128xf32, #tpu.memory_space<vmem>>, vector<1x128xf32>
    %5 = vector.broadcast %4 : vector<1x128xf32> to vector<64x128xf32>
    %6 = arith.addf %3, %5 : vector<64x128xf32>
    %c0_6 = arith.constant 0 : index
    %c0_7 = arith.constant 0 : index
    %7 = vector.load %arg4[%c0_6, %c0_7] : memref<128x128xf32, #tpu.memory_space<vmem>>, vector<128x128xf32>
    %cst_8 = arith.constant dense<0.000000e+00> : vector<64x128xf32>
    %8 = tpu.matmul %1, %7, %cst_8 {dimension_numbers = #tpu.dot_dimension_numbers<[1], [0], [0], [1], [0, 0, 1, 1], [], []>} : vector<64x128xf32>, vector<128x128xf32>, vector<64x128xf32> -> vector<64x128xf32>
    %c0_9 = arith.constant 0 : index
    %c0_10 = arith.constant 0 : index
    %9 = vector.load %arg7[%c0_9, %c0_10] : memref<1x128xf32, #tpu.memory_space<vmem>>, vector<1x128xf32>
    %10 = vector.broadcast %9 : vector<1x128xf32> to vector<64x128xf32>
    %11 = arith.addf %8, %10 : vector<64x128xf32>
    %c0_11 = arith.constant 0 : index
    %c0_12 = arith.constant 0 : index
    %12 = vector.load %arg5[%c0_11, %c0_12] : memref<128x128xf32, #tpu.memory_space<vmem>>, vector<128x128xf32>
    %cst_13 = arith.constant dense<0.000000e+00> : vector<64x128xf32>
    %13 = tpu.matmul %1, %12, %cst_13 {dimension_numbers = #tpu.dot_dimension_numbers<[1], [0], [0], [1], [0, 0, 1, 1], [], []>} : vector<64x128xf32>, vector<128x128xf32>, vector<64x128xf32> -> vector<64x128xf32>
    %c0_14 = arith.constant 0 : index
    %c0_15 = arith.constant 0 : index
    %14 = vector.load %arg8[%c0_14, %c0_15] : memref<1x128xf32, #tpu.memory_space<vmem>>, vector<1x128xf32>
    %15 = vector.broadcast %14 : vector<1x128xf32> to vector<64x128xf32>
    %16 = arith.addf %13, %15 : vector<64x128xf32>
    %c0_16 = arith.constant 0 : index
    %c0_17 = arith.constant 0 : index
    %c0_18 = arith.constant 0 : index
    %17 = vector.load %arg9[%c0_16, %c0_17, %c0_18] : memref<1x1x64xf32, #tpu.memory_space<vmem>>, vector<1x1x64xf32>
    %18 = vector.shape_cast %17 : vector<1x1x64xf32> to vector<1x64xf32>
    %19 = vector.extract_strided_slice %6 {offsets = [0, 0], sizes = [64, 64], strides = [1, 1]} : vector<64x128xf32> to vector<64x64xf32>
    %20 = vector.extract_strided_slice %11 {offsets = [0, 0], sizes = [64, 64], strides = [1, 1]} : vector<64x128xf32> to vector<64x64xf32>
    %21 = vector.extract_strided_slice %16 {offsets = [0, 0], sizes = [64, 64], strides = [1, 1]} : vector<64x128xf32> to vector<64x64xf32>
    %cst_19 = arith.constant dense<0.000000e+00> : vector<64x64xf32>
    %22 = tpu.matmul %19, %20, %cst_19 {dimension_numbers = #tpu.dot_dimension_numbers<[1], [1], [0], [0], [0, 0, 1, 0], [], []>} : vector<64x64xf32>, vector<64x64xf32>, vector<64x64xf32> -> vector<64x64xf32>
    %cst_20 = arith.constant 1.250000e-01 : f32
    %23 = vector.broadcast %cst_20 : f32 to vector<64x64xf32>
    %24 = arith.mulf %22, %23 : vector<64x64xf32>
    %25 = vector.broadcast %18 : vector<1x64xf32> to vector<64x64xf32>
    %26 = arith.addf %24, %25 : vector<64x64xf32>
    %cst_21 = arith.constant dense<0xFF800000> : vector<64xf32>
    %27 = vector.multi_reduction <maximumf>, %26, %cst_21 [1] : vector<64x64xf32> to vector<64xf32>
    %28 = vector.shape_cast %27 : vector<64xf32> to vector<64x1xf32>
    %29 = vector.broadcast %28 : vector<64x1xf32> to vector<64x64xf32>
    %30 = arith.subf %26, %29 : vector<64x64xf32>
    %31 = math.exp %30 : vector<64x64xf32>
    %cst_22 = arith.constant dense<0.000000e+00> : vector<64xf32>
    %32 = vector.multi_reduction <add>, %31, %cst_22 [1] : vector<64x64xf32> to vector<64xf32>
    %33 = vector.shape_cast %32 : vector<64xf32> to vector<64x1xf32>
    %cst_23 = arith.constant dense<0.000000e+00> : vector<64x64xf32>
    %34 = tpu.matmul %31, %21, %cst_23 {dimension_numbers = #tpu.dot_dimension_numbers<[1], [0], [0], [1], [0, 0, 1, 1], [], []>} : vector<64x64xf32>, vector<64x64xf32>, vector<64x64xf32> -> vector<64x64xf32>
    %cst_24 = arith.constant 1.000000e+00 : f32
    %35 = vector.broadcast %cst_24 : f32 to vector<64x1xf32>
    %36 = arith.divf %35, %33 : vector<64x1xf32>
    %37 = vector.broadcast %36 : vector<64x1xf32> to vector<64x64xf32>
    %38 = arith.mulf %34, %37 : vector<64x64xf32>
    %39 = vector.extract_strided_slice %6 {offsets = [0, 64], sizes = [64, 64], strides = [1, 1]} : vector<64x128xf32> to vector<64x64xf32>
    %40 = vector.extract_strided_slice %11 {offsets = [0, 64], sizes = [64, 64], strides = [1, 1]} : vector<64x128xf32> to vector<64x64xf32>
    %41 = vector.extract_strided_slice %16 {offsets = [0, 64], sizes = [64, 64], strides = [1, 1]} : vector<64x128xf32> to vector<64x64xf32>
    %cst_25 = arith.constant dense<0.000000e+00> : vector<64x64xf32>
    %42 = tpu.matmul %39, %40, %cst_25 {dimension_numbers = #tpu.dot_dimension_numbers<[1], [1], [0], [0], [0, 0, 1, 0], [], []>} : vector<64x64xf32>, vector<64x64xf32>, vector<64x64xf32> -> vector<64x64xf32>
    %cst_26 = arith.constant 1.250000e-01 : f32
    %43 = vector.broadcast %cst_26 : f32 to vector<64x64xf32>
    %44 = arith.mulf %42, %43 : vector<64x64xf32>
    %45 = vector.broadcast %18 : vector<1x64xf32> to vector<64x64xf32>
    %46 = arith.addf %44, %45 : vector<64x64xf32>
    %cst_27 = arith.constant dense<0xFF800000> : vector<64xf32>
    %47 = vector.multi_reduction <maximumf>, %46, %cst_27 [1] : vector<64x64xf32> to vector<64xf32>
    %48 = vector.shape_cast %47 : vector<64xf32> to vector<64x1xf32>
    %49 = vector.broadcast %48 : vector<64x1xf32> to vector<64x64xf32>
    %50 = arith.subf %46, %49 : vector<64x64xf32>
    %51 = math.exp %50 : vector<64x64xf32>
    %cst_28 = arith.constant dense<0.000000e+00> : vector<64xf32>
    %52 = vector.multi_reduction <add>, %51, %cst_28 [1] : vector<64x64xf32> to vector<64xf32>
    %53 = vector.shape_cast %52 : vector<64xf32> to vector<64x1xf32>
    %cst_29 = arith.constant dense<0.000000e+00> : vector<64x64xf32>
    %54 = tpu.matmul %51, %41, %cst_29 {dimension_numbers = #tpu.dot_dimension_numbers<[1], [0], [0], [1], [0, 0, 1, 1], [], []>} : vector<64x64xf32>, vector<64x64xf32>, vector<64x64xf32> -> vector<64x64xf32>
    %cst_30 = arith.constant 1.000000e+00 : f32
    %55 = vector.broadcast %cst_30 : f32 to vector<64x1xf32>
    %56 = arith.divf %55, %53 : vector<64x1xf32>
    %57 = vector.broadcast %56 : vector<64x1xf32> to vector<64x64xf32>
    %58 = arith.mulf %54, %57 : vector<64x64xf32>
    %59 = tpu.concatenate %38, %58 in 1 : vector<64x64xf32>, vector<64x64xf32> -> vector<64x128xf32>
    %c0_31 = arith.constant 0 : index
    %c0_32 = arith.constant 0 : index
    %c0_33 = arith.constant 0 : index
    %60 = vector.load %arg10[%c0_31, %c0_32, %c0_33] : memref<1x64x128xf32, #tpu.memory_space<vmem>>, vector<1x64x128xf32>
    %61 = vector.shape_cast %60 : vector<1x64x128xf32> to vector<64x128xf32>
    %62 = vector.shape_cast %59 : vector<64x128xf32> to vector<1x64x128xf32>
    tpu.vector_store %arg10[%c0_31, %c0_32, %c0_33], %62 {strides = array<i32>} : memref<1x64x128xf32, #tpu.memory_space<vmem>>, vector<1x64x128xf32>,
    return
  }
  func.func @transform_0(%arg0: i32, %arg1: i32) -> (i32, i32, i32) {
    %c0_i32 = arith.constant 0 : i32
    %c0_i32_0 = arith.constant 0 : i32
    %c0_i32_1 = arith.constant 0 : i32
    return %arg0, %c0_i32, %c0_i32_0 : i32, i32, i32
  }
  func.func @transform_1(%arg0: i32, %arg1: i32) -> (i32, i32) {
    %c0_i32 = arith.constant 0 : i32
    %c0_i32_0 = arith.constant 0 : i32
    return %c0_i32, %arg1 : i32, i32
  }
  func.func @transform_2(%arg0: i32, %arg1: i32) -> (i32, i32) {
    %c0_i32 = arith.constant 0 : i32
    %c0_i32_0 = arith.constant 0 : i32
    return %c0_i32, %arg1 : i32, i32
  }
  func.func @transform_3(%arg0: i32, %arg1: i32) -> (i32, i32) {
    %c0_i32 = arith.constant 0 : i32
    %c0_i32_0 = arith.constant 0 : i32
    return %c0_i32, %arg1 : i32, i32
  }
  func.func @transform_4(%arg0: i32, %arg1: i32) -> (i32, i32) {
    %c0_i32 = arith.constant 0 : i32
    %c0_i32_0 = arith.constant 0 : i32
    return %c0_i32, %arg1 : i32, i32
  }
  func.func @transform_5(%arg0: i32, %arg1: i32) -> (i32, i32) {
    %c0_i32 = arith.constant 0 : i32
    %c0_i32_0 = arith.constant 0 : i32
    return %c0_i32, %arg1 : i32, i32
  }
  func.func @transform_6(%arg0: i32, %arg1: i32) -> (i32, i32) {
    %c0_i32 = arith.constant 0 : i32
    %c0_i32_0 = arith.constant 0 : i32
    return %c0_i32, %arg1 : i32, i32
  }
  func.func @transform_7(%arg0: i32, %arg1: i32) -> (i32, i32, i32) {
    %c0_i32 = arith.constant 0 : i32
    %c0_i32_0 = arith.constant 0 : i32
    %c0_i32_1 = arith.constant 0 : i32
    return %arg0, %c0_i32, %c0_i32_0 : i32, i32, i32
  }
  func.func @transform_8(%arg0: i32, %arg1: i32) -> (i32, i32, i32) {
    %c0_i32 = arith.constant 0 : i32
    %c0_i32_0 = arith.constant 0 : i32
    return %arg0, %c0_i32, %arg1 : i32, i32, i32
  }
}

</mosaic_0001>

<llo_original>
// kernel: tpu_custom_call.1
$region0: #{tpu_custom_call.1}
  #allocation0 [shape = 'u32[]', space=smem, size = 0x4, offset = 0x4, fixed_abs, tag = 'smem constant byte address 0x4 - core index']
  #allocation1 [shape = 'u32[144,128]{1,0:T(1,128)}', space=vmem, size = 0x12000, scoped, tag = 'internal scratch']
  %s0 = inlined_call_operand.hbm [shape: f32[2,64,128], index: 0, kind: input, shape index: {}]
  %s1 = inlined_call_operand.hbm [shape: f32[128,128], index: 1, kind: input, shape index: {}]
  %s2 = inlined_call_operand.hbm [shape: f32[128,128], index: 2, kind: input, shape index: {}]
  %s3 = inlined_call_operand.hbm [shape: f32[128,128], index: 3, kind: input, shape index: {}]
  %s4 = inlined_call_operand.vmem [shape: f32[1,128], index: 4, kind: input, shape index: {}]
  %s5 = inlined_call_operand.vmem [shape: f32[1,128], index: 5, kind: input, shape index: {}]
  %s6 = inlined_call_operand.vmem [shape: f32[1,128], index: 6, kind: input, shape index: {}]
  %s7 = inlined_call_operand.vmem [shape: f32[2,1,64], index: 7, kind: input, shape index: {}]
  %s8 = inlined_call_operand.hbm [shape: f32[2,64,128], index: 8, kind: output, shape index: {}]
  %s9 = sld [smem:[#allocation0]]
  $region81: #{tpu_custom_call.1} parent=0
    _
  %s11 = ssub.s32 1, %s9
  %s12 = scalar_select 0, %s11, %s9
  $region1: #{tpu_custom_call.1} parent=0
    #allocation2 [shape = 'u8[65536]{0}', space=vmem, size = 0x10000, scoped, tag = 'input window, operand 0']
    #allocation3 [shape = 's32[2]{0}', space=sflag, size = 0x8, scoped, tag = 'scoped memory for tpu_custom_call.1']
    #allocation4 [shape = 's32[2]{0}', space=sflag, size = 0x8, scoped, tag = 'scoped memory for tpu_custom_call.1']
    #allocation5 [shape = 'u8[65536]{0}', space=vmem, size = 0x10000, scoped, tag = 'input window, operand 1, single buffered']
    #allocation6 [shape = 's32[1]{0}', space=sflag, size = 0x4, scoped, tag = 'scoped memory for tpu_custom_call.1']
    #allocation7 [shape = 'u8[65536]{0}', space=vmem, size = 0x10000, scoped, tag = 'input window, operand 2, single buffered']
    #allocation8 [shape = 'u8[65536]{0}', space=vmem, size = 0x10000, scoped, tag = 'input window, operand 3, single buffered']
    #allocation9 [shape = 's32[1]{0}', space=sflag, size = 0x4, scoped, tag = 'scoped memory for tpu_custom_call.1']
    #allocation10 [shape = 'u8[65536]{0}', space=vmem, size = 0x10000, scoped, tag = 'output window, operand 0']
    %13 = vsyncpa [#allocation3], 0
    %s14 = scalar_lea.sflag [#allocation3], 1
    %15 = vsyncpa %s14, 0
    %16 = vsyncpa [#allocation6], 0
    %17 = vsyncpa [#allocation9], 0
    %18 = vsyncpa [#allocation4], 0
    %s19 = scalar_lea.sflag [#allocation4], 1
    %20 = vsyncpa %s19, 0
    loop: start=0, step=1, limit=4
    $region2: #{tpu_custom_call.1} parent=1 // loop_pre_header
      _
    $region3: #{tpu_custom_call.1} parent=1 // loop_header
      %s22 = sphi 0, %s26
      %p23 = scmp.ge.s32.totalorder %s22, 4
      %s29 = sphi 0, %s41
      %s30 = sphi 0, %s37
      %s31 = sphi 0, %s29
      %s32 = sphi 0, %s30
      %s33 = sphi 0, %s31
      %s34 = sphi 0, %s32
      %s44 = sphi 0, %s46
      %s47 = sphi 0, %s44
      %s48 = sphi 0, %s47
      %s64 = sphi 0, %s48
      %s70 = sphi 0, %s72
      %s73 = sphi 0, %s70
      %s74 = sphi 0, %s73
      %s90 = sphi 0, %s74
      %s96 = sphi 0, %s98
      %s99 = sphi 0, %s96
      %s100 = sphi 0, %s99
      %s116 = sphi 0, %s100
      %s122 = sphi 0, %s124
      %s125 = sphi 0, %s122
      %s126 = sphi 0, %s125
      %s142 = sphi 0, %s126
      %s148 = sphi 0, %s150
      %s151 = sphi 0, %s148
      %s152 = sphi 0, %s151
      %s168 = sphi 0, %s152
      %s174 = sphi 0, %s176
      %s177 = sphi 0, %s174
      %s178 = sphi 0, %s177
      %s194 = sphi 0, %s178
      %s200 = sphi 0, %s202
      %s203 = sphi 0, %s200
      %s204 = sphi 0, %s203
      %s220 = sphi 0, %s204
      %s226 = sphi 0, %s228
      %s229 = sphi 0, %s226
      %s230 = sphi 0, %s229
      %s246 = sphi 0, %s230
      %s254 = sphi 0, %s256
      %s257 = sphi 0, %s254
      %s258 = sphi 0, %s257
      %s274 = sphi 0, %s258
    $region4: #{tpu_custom_call.1} parent=1 // loop_header_branch
      %25 = sbr.rel (%p23) target = $region8
    $region5: #{tpu_custom_call.1} parent=1 // loop_body
      %s27 = ssub.s32 %s22, 1
      %s28 = ssub.s32 %s22, 2
      %s35 = sadd.s32 1, %s30
      %p36 = scmp.ge.s32.totalorder %s35, 1
      %s37 = scalar_select %p36, 0, %s35
      %s38 = sadd.s32 1, %s29
      %s39 = scalar_select %p36, %s38, %s29
      %p40 = scmp.ge.s32.totalorder %s39, 2
      %s41 = scalar_select %p40, 0, %s39
      %s42 = ssub.s32 %s29, %s41
      %p43 = scmp.eq.s32.totalorder %s42, 0
      %s45 = sadd.s32 %s44, 1
      %s46 = scalar_select %p43, %s44, %s45
      %p49 = pneg %p43
      %p50 = scmp.eq.s32.totalorder %s22, 1
      %p51 = por %p49, %p50
      %p52 = scmp.ne.s32.totalorder %s44, %s47
      %p53 = scmp.eq.s32.totalorder %s22, 0
      %p54 = por %p52, %p53
      %p55 = scmp.ne.s32.totalorder %s44, %s47
      %p56 = scmp.eq.s32.totalorder %s27, 1
      %p57 = por %p55, %p56
      %p58 = scmp.ne.s32.totalorder %s47, %s48
      %p59 = scmp.eq.s32.totalorder %s27, 0
      %p60 = por %p58, %p59
      %p61 = scmp.ne.s32.totalorder %s47, %s48
      %p62 = scmp.eq.s32.totalorder %s28, 1
      %p63 = por %p61, %p62
      %p65 = scmp.ne.s32.totalorder %s48, %s64
      %p66 = scmp.eq.s32.totalorder %s28, 0
      %p67 = por %p65, %p66
      %s68 = ssub.s32 %s30, %s37
      %p69 = scmp.eq.s32.totalorder %s68, 0
      %s71 = sadd.s32 %s70, 1
      %s72 = scalar_select %p69, %s70, %s71
      %p75 = pneg %p69
      %p76 = scmp.eq.s32.totalorder %s22, 1
      %p77 = por %p75, %p76
      %p78 = scmp.ne.s32.totalorder %s70, %s73
      %p79 = scmp.eq.s32.totalorder %s22, 0
      %p80 = por %p78, %p79
      %p81 = scmp.ne.s32.totalorder %s70, %s73
      %p82 = scmp.eq.s32.totalorder %s27, 1
      %p83 = por %p81, %p82
      %p84 = scmp.ne.s32.totalorder %s73, %s74
      %p85 = scmp.eq.s32.totalorder %s27, 0
      %p86 = por %p84, %p85
      %p87 = scmp.ne.s32.totalorder %s73, %s74
      %p88 = scmp.eq.s32.totalorder %s28, 1
      %p89 = por %p87, %p88
      %p91 = scmp.ne.s32.totalorder %s74, %s90
      %p92 = scmp.eq.s32.totalorder %s28, 0
      %p93 = por %p91, %p92
      %s94 = ssub.s32 %s30, %s37
      %p95 = scmp.eq.s32.totalorder %s94, 0
      %s97 = sadd.s32 %s96, 1
      %s98 = scalar_select %p95, %s96, %s97
      %p101 = pneg %p95
      %p102 = scmp.eq.s32.totalorder %s22, 1
      %p103 = por %p101, %p102
      %p104 = scmp.ne.s32.totalorder %s96, %s99
      %p105 = scmp.eq.s32.totalorder %s22, 0
      %p106 = por %p104, %p105
      %p107 = scmp.ne.s32.totalorder %s96, %s99
      %p108 = scmp.eq.s32.totalorder %s27, 1
      %p109 = por %p107, %p108
      %p110 = scmp.ne.s32.totalorder %s99, %s100
      %p111 = scmp.eq.s32.totalorder %s27, 0
      %p112 = por %p110, %p111
      %p113 = scmp.ne.s32.totalorder %s99, %s100
      %p114 = scmp.eq.s32.totalorder %s28, 1
      %p115 = por %p113, %p114
      %p117 = scmp.ne.s32.totalorder %s100, %s116
      %p118 = scmp.eq.s32.totalorder %s28, 0
      %p119 = por %p117, %p118
      %s120 = ssub.s32 %s30, %s37
      %p121 = scmp.eq.s32.totalorder %s120, 0
      %s123 = sadd.s32 %s122, 1
      %s124 = scalar_select %p121, %s122, %s123
      %p127 = pneg %p121
      %p128 = scmp.eq.s32.totalorder %s22, 1
      %p129 = por %p127, %p128
      %p130 = scmp.ne.s32.totalorder %s122, %s125
      %p131 = scmp.eq.s32.totalorder %s22, 0
      %p132 = por %p130, %p131
      %p133 = scmp.ne.s32.totalorder %s122, %s125
      %p134 = scmp.eq.s32.totalorder %s27, 1
      %p135 = por %p133, %p134
      %p136 = scmp.ne.s32.totalorder %s125, %s126
      %p137 = scmp.eq.s32.totalorder %s27, 0
      %p138 = por %p136, %p137
      %p139 = scmp.ne.s32.totalorder %s125, %s126
      %p140 = scmp.eq.s32.totalorder %s28, 1
      %p141 = por %p139, %p140
      %p143 = scmp.ne.s32.totalorder %s126, %s142
      %p144 = scmp.eq.s32.totalorder %s28, 0
      %p145 = por %p143, %p144
      %s146 = ssub.s32 %s30, %s37
      %p147 = scmp.eq.s32.totalorder %s146, 0
      %s149 = sadd.s32 %s148, 1
      %s150 = scalar_select %p147, %s148, %s149
      %p153 = pneg %p147
      %p154 = scmp.eq.s32.totalorder %s22, 1
      %p155 = por %p153, %p154
      %p156 = scmp.ne.s32.totalorder %s148, %s151
      %p157 = scmp.eq.s32.totalorder %s22, 0
      %p158 = por %p156, %p157
      %p159 = scmp.ne.s32.totalorder %s148, %s151
      %p160 = scmp.eq.s32.totalorder %s27, 1
      %p161 = por %p159, %p160
      %p162 = scmp.ne.s32.totalorder %s151, %s152
      %p163 = scmp.eq.s32.totalorder %s27, 0
      %p164 = por %p162, %p163
      %p165 = scmp.ne.s32.totalorder %s151, %s152
      %p166 = scmp.eq.s32.totalorder %s28, 1
      %p167 = por %p165, %p166
      %p169 = scmp.ne.s32.totalorder %s152, %s168
      %p170 = scmp.eq.s32.totalorder %s28, 0
      %p171 = por %p169, %p170
      %s172 = ssub.s32 %s30, %s37
      %p173 = scmp.eq.s32.totalorder %s172, 0
      %s175 = sadd.s32 %s174, 1
      %s176 = scalar_select %p173, %s174, %s175
      %p179 = pneg %p173
      %p180 = scmp.eq.s32.totalorder %s22, 1
      %p181 = por %p179, %p180
      %p182 = scmp.ne.s32.totalorder %s174, %s177
      %p183 = scmp.eq.s32.totalorder %s22, 0
      %p184 = por %p182, %p183
      %p185 = scmp.ne.s32.totalorder %s174, %s177
      %p186 = scmp.eq.s32.totalorder %s27, 1
      %p187 = por %p185, %p186
      %p188 = scmp.ne.s32.totalorder %s177, %s178
      %p189 = scmp.eq.s32.totalorder %s27, 0
      %p190 = por %p188, %p189
      %p191 = scmp.ne.s32.totalorder %s177, %s178
      %p192 = scmp.eq.s32.totalorder %s28, 1
      %p193 = por %p191, %p192
      %p195 = scmp.ne.s32.totalorder %s178, %s194
      %p196 = scmp.eq.s32.totalorder %s28, 0
      %p197 = por %p195, %p196
      %s198 = ssub.s32 %s30, %s37
      %p199 = scmp.eq.s32.totalorder %s198, 0
      %s201 = sadd.s32 %s200, 1
      %s202 = scalar_select %p199, %s200, %s201
      %p205 = pneg %p199
      %p206 = scmp.eq.s32.totalorder %s22, 1
      %p207 = por %p205, %p206
      %p208 = scmp.ne.s32.totalorder %s200, %s203
      %p209 = scmp.eq.s32.totalorder %s22, 0
      %p210 = por %p208, %p209
      %p211 = scmp.ne.s32.totalorder %s200, %s203
      %p212 = scmp.eq.s32.totalorder %s27, 1
      %p213 = por %p211, %p212
      %p214 = scmp.ne.s32.totalorder %s203, %s204
      %p215 = scmp.eq.s32.totalorder %s27, 0
      %p216 = por %p214, %p215
      %p217 = scmp.ne.s32.totalorder %s203, %s204
      %p218 = scmp.eq.s32.totalorder %s28, 1
      %p219 = por %p217, %p218
      %p221 = scmp.ne.s32.totalorder %s204, %s220
      %p222 = scmp.eq.s32.totalorder %s28, 0
      %p223 = por %p221, %p222
      %s224 = ssub.s32 %s29, %s41
      %p225 = scmp.eq.s32.totalorder %s224, 0
      %s227 = sadd.s32 %s226, 1
      %s228 = scalar_select %p225, %s226, %s227
      %p231 = pneg %p225
      %p232 = scmp.eq.s32.totalorder %s22, 1
      %p233 = por %p231, %p232
      %p234 = scmp.ne.s32.totalorder %s226, %s229
      %p235 = scmp.eq.s32.totalorder %s22, 0
      %p236 = por %p234, %p235
      %p237 = scmp.ne.s32.totalorder %s226, %s229
      %p238 = scmp.eq.s32.totalorder %s27, 1
      %p239 = por %p237, %p238
      %p240 = scmp.ne.s32.totalorder %s229, %s230
      %p241 = scmp.eq.s32.totalorder %s27, 0
      %p242 = por %p240, %p241
      %p243 = scmp.ne.s32.totalorder %s229, %s230
      %p244 = scmp.eq.s32.totalorder %s28, 1
      %p245 = por %p243, %p244
      %p247 = scmp.ne.s32.totalorder %s230, %s246
      %p248 = scmp.eq.s32.totalorder %s28, 0
      %p249 = por %p247, %p248
      %s250 = ssub.s32 %s29, %s41
      %s251 = ssub.s32 %s30, %s37
      %s252 = sor.u32 %s250, %s251
      %p253 = scmp.eq.s32.totalorder %s252, 0
      %s255 = sadd.s32 %s254, 1
      %s256 = scalar_select %p253, %s254, %s255
      %p259 = pneg %p253
      %p260 = scmp.eq.s32.totalorder %s22, 1
      %p261 = por %p259, %p260
      %p262 = scmp.ne.s32.totalorder %s254, %s257
      %p263 = scmp.eq.s32.totalorder %s22, 0
      %p264 = por %p262, %p263
      %p265 = scmp.ne.s32.totalorder %s254, %s257
      %p266 = scmp.eq.s32.totalorder %s27, 1
      %p267 = por %p265, %p266
      %p268 = scmp.ne.s32.totalorder %s257, %s258
      %p269 = scmp.eq.s32.totalorder %s27, 0
      %p270 = por %p268, %p269
      %p271 = scmp.ne.s32.totalorder %s257, %s258
      %p272 = scmp.eq.s32.totalorder %s28, 1
      %p273 = por %p271, %p272
      %p275 = scmp.ne.s32.totalorder %s258, %s274
      %p276 = scmp.eq.s32.totalorder %s28, 0
      %p277 = por %p275, %p276
      %p278 = scmp.le.s32.totalorder 1, %s22
      %p279 = scmp.lt.s32.totalorder %s22, 3
      %p280 = pnand %p278, %p279
      %p281 = pneg %p280
      // Predicated region
      $region9: #{tpu_custom_call.1} parent=5 // pred_check
        _
      $region10: #{tpu_custom_call.1} parent=5 // pred_check_branch
        %283 = sbr.rel (%p280) target = $region12
      $region11: #{tpu_custom_call.1} parent=5 // pred_region
        %s284 = ssub.s32 %s22, 1
        // Predicated region
        $region13: #{tpu_custom_call.1} parent=11 // pred_check
          %p285 = pneg %p86
        $region14: #{tpu_custom_call.1} parent=11 // pred_check_branch
          %287 = sbr.rel (%p285) target = $region16
        $region15: #{tpu_custom_call.1} parent=11 // pred_region
          %s289 = ssub.s32 2048, 2048
          %290 = vsyncadd [#allocation6], %s289
          %s291 = smul.addr %s32, 128
          %s292 = scalar_lea.hbm %s1, %s291
          %s293 = sshll.u32 [#allocation5], 4
          %s294 = int_to_ptr.vmem [resolvable:$true] %s293
          %299 = dma.hbm_to_vmem [thread:$0]  %s292, 2048, %s294, [#allocation6], 128, 128, 8
        $region16: #{tpu_custom_call.1} parent=11 // pred_fallthru
          _
        // Predicated region
        $region17: #{tpu_custom_call.1} parent=11 // pred_check
          %p300 = pneg %p112
        $region18: #{tpu_custom_call.1} parent=11 // pred_check_branch
          %302 = sbr.rel (%p300) target = $region20
        $region19: #{tpu_custom_call.1} parent=11 // pred_region
          %s304 = ssub.s32 2048, 2048
          %305 = vsyncadd [#allocation6], %s304
          %s306 = smul.addr %s32, 128
          %s307 = scalar_lea.hbm %s2, %s306
          %s308 = sshll.u32 [#allocation7], 4
          %s309 = int_to_ptr.vmem [resolvable:$true] %s308
          %314 = dma.hbm_to_vmem [thread:$0]  %s307, 2048, %s309, [#allocation6], 128, 128, 8
        $region20: #{tpu_custom_call.1} parent=11 // pred_fallthru
          _
        // Predicated region
        $region21: #{tpu_custom_call.1} parent=11 // pred_check
          %p315 = pneg %p138
        $region22: #{tpu_custom_call.1} parent=11 // pred_check_branch
          %317 = sbr.rel (%p315) target = $region24
        $region23: #{tpu_custom_call.1} parent=11 // pred_region
          %s319 = ssub.s32 2048, 2048
          %320 = vsyncadd [#allocation9], %s319
          %s321 = smul.addr %s32, 128
          %s322 = scalar_lea.hbm %s3, %s321
          %s323 = sshll.u32 [#allocation8], 4
          %s324 = int_to_ptr.vmem [resolvable:$true] %s323
          %329 = dma.hbm_to_vmem [thread:$0]  %s322, 2048, %s324, [#allocation9], 128, 128, 8
        $region24: #{tpu_custom_call.1} parent=11 // pred_fallthru
          _
        // Predicated region
        $region25: #{tpu_custom_call.1} parent=11 // pred_check
          %p330 = pneg %p164
        $region26: #{tpu_custom_call.1} parent=11 // pred_check_branch
          %332 = sbr.rel (%p330) target = $region28
        $region27: #{tpu_custom_call.1} parent=11 // pred_region
          %p333 = scmp.lt.s32.totalorder %s32, 0
          %s334 = scalar_select %p333, %s32, 0
          %s335 = scalar_lea.vmem %s4, %s334
        $region28: #{tpu_custom_call.1} parent=11 // pred_fallthru
          _
        // Predicated region
        $region29: #{tpu_custom_call.1} parent=11 // pred_check
          %p336 = pneg %p190
        $region30: #{tpu_custom_call.1} parent=11 // pred_check_branch
          %338 = sbr.rel (%p336) target = $region32
        $region31: #{tpu_custom_call.1} parent=11 // pred_region
          %p339 = scmp.lt.s32.totalorder %s32, 0
          %s340 = scalar_select %p339, %s32, 0
          %s341 = scalar_lea.vmem %s5, %s340
        $region32: #{tpu_custom_call.1} parent=11 // pred_fallthru
          _
        // Predicated region
        $region33: #{tpu_custom_call.1} parent=11 // pred_check
          %p342 = pneg %p216
        $region34: #{tpu_custom_call.1} parent=11 // pred_check_branch
          %344 = sbr.rel (%p342) target = $region36
        $region35: #{tpu_custom_call.1} parent=11 // pred_region
          %p345 = scmp.lt.s32.totalorder %s32, 0
          %s346 = scalar_select %p345, %s32, 0
          %s347 = scalar_lea.vmem %s6, %s346
        $region36: #{tpu_custom_call.1} parent=11 // pred_fallthru
          _
      $region12: #{tpu_custom_call.1} parent=5 // pred_fallthru
        _
      %p348 = scmp.lt.s32.totalorder %s22, 2
      // Predicated region
      $region37: #{tpu_custom_call.1} parent=5 // pred_check
        %p349 = pneg %p348
      $region38: #{tpu_custom_call.1} parent=5 // pred_check_branch
        %351 = sbr.rel (%p349) target = $region40
      $region39: #{tpu_custom_call.1} parent=5 // pred_region
        // Predicated region
        $region41: #{tpu_custom_call.1} parent=39 // pred_check
          %p352 = pneg %p54
        $region42: #{tpu_custom_call.1} parent=39 // pred_check_branch
          %354 = sbr.rel (%p352) target = $region44
        $region43: #{tpu_custom_call.1} parent=39 // pred_region
          %s355 = sand.u32 %s44, 1
          %s356 = scalar_lea.sflag [#allocation3], %s355
          %s357 = sand.u32 %s44, 1
          %s358 = smul.addr %s357, 64
          %s359 = scalar_lea.vmem [#allocation2], %s358
          %s361 = ssub.s32 1024, 1024
          %362 = vsyncadd %s356, %s361
          %s363 = smul.addr %s29, 8
          %s364 = smul.addr %s363, 128
          %s365 = scalar_lea.hbm %s0, %s364
          %s366 = sshll.u32 %s359, 4
          %s367 = int_to_ptr.vmem [resolvable:$true] %s366
          %372 = dma.hbm_to_vmem [thread:$0]  %s365, 1024, %s367, %s356, 128, 128, 8
        $region44: #{tpu_custom_call.1} parent=39 // pred_fallthru
          _
        // Predicated region
        $region45: #{tpu_custom_call.1} parent=39 // pred_check
          %p373 = pneg %p236
        $region46: #{tpu_custom_call.1} parent=39 // pred_check_branch
          %375 = sbr.rel (%p373) target = $region48
        $region47: #{tpu_custom_call.1} parent=39 // pred_region
          %p376 = scmp.lt.s32.totalorder %s29, 1
          %s377 = scalar_select %p376, %s29, 1
          %s378 = scalar_lea.vmem %s7, %s377
        $region48: #{tpu_custom_call.1} parent=39 // pred_fallthru
          _
      $region40: #{tpu_custom_call.1} parent=5 // pred_fallthru
        _
      %p379 = scmp.le.s32.totalorder 1, %s22
      %p380 = scmp.lt.s32.totalorder %s22, 3
      %p381 = pnand %p379, %p380
      %p382 = pneg %p381
      // Predicated region
      $region49: #{tpu_custom_call.1} parent=5 // pred_check
        _
      $region50: #{tpu_custom_call.1} parent=5 // pred_check_branch
        %384 = sbr.rel (%p381) target = $region52
      $region51: #{tpu_custom_call.1} parent=5 // pred_region
        %s385 = ssub.s32 %s22, 1
        %s386 = sand.u32 %s47, 1
        %s387 = scalar_lea.sflag [#allocation3], %s386
        %s388 = sand.u32 %s47, 1
        %s389 = smul.addr %s388, 64
        %s390 = scalar_lea.vmem [#allocation2], %s389
        // Predicated region
        $region53: #{tpu_custom_call.1} parent=51 // pred_check
          %p391 = pneg %p60
        $region54: #{tpu_custom_call.1} parent=51 // pred_check_branch
          %393 = sbr.rel (%p391) target = $region56
        $region55: #{tpu_custom_call.1} parent=51 // pred_region
          %394 = dma.done %s387, 1024
        $region56: #{tpu_custom_call.1} parent=51 // pred_fallthru
          _
        // Predicated region
        $region57: #{tpu_custom_call.1} parent=51 // pred_check
          %p395 = pneg %p86
        $region58: #{tpu_custom_call.1} parent=51 // pred_check_branch
          %397 = sbr.rel (%p395) target = $region60
        $region59: #{tpu_custom_call.1} parent=51 // pred_region
          %398 = dma.done [#allocation6], 2048
        $region60: #{tpu_custom_call.1} parent=51 // pred_fallthru
          _
        // Predicated region
        $region61: #{tpu_custom_call.1} parent=51 // pred_check
          %p399 = pneg %p112
        $region62: #{tpu_custom_call.1} parent=51 // pred_check_branch
          %401 = sbr.rel (%p399) target = $region64
        $region63: #{tpu_custom_call.1} parent=51 // pred_region
          %402 = dma.done [#allocation6], 2048
        $region64: #{tpu_custom_call.1} parent=51 // pred_fallthru
          _
        // Predicated region
        $region65: #{tpu_custom_call.1} parent=51 // pred_check
          %p403 = pneg %p138
        $region66: #{tpu_custom_call.1} parent=51 // pred_check_branch
          %405 = sbr.rel (%p403) target = $region68
        $region67: #{tpu_custom_call.1} parent=51 // pred_region
          %406 = dma.done [#allocation9], 2048
        $region68: #{tpu_custom_call.1} parent=51 // pred_fallthru
          _
        %s407 = sand.u32 %s47, 1
        %s408 = scalar_lea.sflag [#allocation3], %s407
        %s409 = sand.u32 %s47, 1
        %s410 = smul.addr %s409, 64
        %s411 = scalar_lea.vmem [#allocation2], %s410
        %p412 = pneg %p60
        %p413 = pneg %p57
        %p414 = pneg %p86
        %p415 = pneg %p83
        %p416 = pneg %p112
        %p417 = pneg %p109
        %p418 = pneg %p138
        %p419 = pneg %p135
        %p420 = scmp.lt.s32.totalorder %s32, 0
        %s421 = scalar_select %p420, %s32, 0
        %s422 = scalar_lea.vmem %s4, %s421
        %p423 = pneg %p164
        %p424 = pneg %p161
        %p425 = scmp.lt.s32.totalorder %s32, 0
        %s426 = scalar_select %p425, %s32, 0
        %s427 = scalar_lea.vmem %s5, %s426
        %p428 = pneg %p190
        %p429 = pneg %p187
        %p430 = scmp.lt.s32.totalorder %s32, 0
        %s431 = scalar_select %p430, %s32, 0
        %s432 = scalar_lea.vmem %s6, %s431
        %p433 = pneg %p216
        %p434 = pneg %p213
        %p435 = scmp.lt.s32.totalorder %s31, 1
        %s436 = scalar_select %p435, %s31, 1
        %s437 = scalar_lea.vmem %s7, %s436
        %p438 = pneg %p242
        %p439 = pneg %p239
        %p440 = pneg %p270
        %p441 = pneg %p267
        %s442 = sand.u32 %s257, 1
        %s443 = scalar_lea.sflag [#allocation4], %s442
        %s444 = sand.u32 %s257, 1
        %s445 = smul.addr %s444, 64
        %s446 = scalar_lea.vmem [#allocation10], %s445
        %p447 = scmp.lt.s32.totalorder %s32, 0
        %s448 = scalar_select %p447, %s32, 0
        %s449 = scalar_lea.vmem %s4, %s448
        %p450 = scmp.lt.s32.totalorder %s32, 0
        %s451 = scalar_select %p450, %s32, 0
        %s452 = scalar_lea.vmem %s5, %s451
        %p453 = scmp.lt.s32.totalorder %s32, 0
        %s454 = scalar_select %p453, %s32, 0
        %s455 = scalar_lea.vmem %s6, %s454
        %p456 = scmp.lt.s32.totalorder %s31, 1
        %s457 = scalar_select %p456, %s31, 1
        %s458 = scalar_lea.vmem %s7, %s457
        %v459 = vld [vmem:[%s390] sm:$0xff]
        %v460 = vld [vmem:[%s390 + $0x8] sm:$0xff]
        %v461 = vld [vmem:[%s390 + $0x10] sm:$0xff]
        %v462 = vld [vmem:[%s390 + $0x18] sm:$0xff]
        %v463 = vld [vmem:[%s390 + $0x20] sm:$0xff]
        %v464 = vld [vmem:[%s390 + $0x28] sm:$0xff]
        %v465 = vld [vmem:[%s390 + $0x30] sm:$0xff]
        %v466 = vld [vmem:[%s390 + $0x38] sm:$0xff]
        %v467 = vld [vmem:[#allocation5] sm:$0xff]
        %v468 = vld [vmem:[#allocation5 + $0x8] sm:$0xff]
        %v469 = vld [vmem:[#allocation5 + $0x10] sm:$0xff]
        %v470 = vld [vmem:[#allocation5 + $0x18] sm:$0xff]
        %v471 = vld [vmem:[#allocation5 + $0x20] sm:$0xff]
        %v472 = vld [vmem:[#allocation5 + $0x28] sm:$0xff]
        %v473 = vld [vmem:[#allocation5 + $0x30] sm:$0xff]
        %v474 = vld [vmem:[#allocation5 + $0x38] sm:$0xff]
        %v475 = vld [vmem:[#allocation5 + $0x40] sm:$0xff]
        %v476 = vld [vmem:[#allocation5 + $0x48] sm:$0xff]
        %v477 = vld [vmem:[#allocation5 + $0x50] sm:$0xff]
        %v478 = vld [vmem:[#allocation5 + $0x58] sm:$0xff]
        %v479 = vld [vmem:[#allocation5 + $0x60] sm:$0xff]
        %v480 = vld [vmem:[#allocation5 + $0x68] sm:$0xff]
        %v481 = vld [vmem:[#allocation5 + $0x70] sm:$0xff]
        %v482 = vld [vmem:[#allocation5 + $0x78] sm:$0xff]
        %v483 = vld [vmem:[%s449] sm:$0x1]
        %v485 = vlaneseq
        %v486 = vshrl.u32 %v485, 7
        %v487 = vsub.s32 0, %v486
        %v488 = vrot.slane %v483, %v487
        %490 = vmatprep.subr.mxu0 0.0
        %491 = vmatpush1.msra.mxu0 %v467
        %492 = vmatprep.subr.mxu0 0.0
        %493 = vmatpush1.msra.mxu0 %v468
        %494 = vmatprep.subr.mxu0 0.0
        %495 = vmatpush1.msra.mxu0 %v469
        %496 = vmatprep.subr.mxu0 0.0
        %497 = vmatpush1.msra.mxu0 %v470
        %498 = vmatprep.subr.mxu0 0.0
        %499 = vmatpush1.msra.mxu0 %v471
        %500 = vmatprep.subr.mxu0 0.0
        %501 = vmatpush1.msra.mxu0 %v472
        %502 = vmatprep.subr.mxu0 0.0
        %503 = vmatpush1.msra.mxu0 %v473
        %504 = vmatprep.subr.mxu0 0.0
        %505 = vmatpush1.msra.mxu0 %v474
        %506 = vmatprep.subr.mxu0 0.0
        %507 = vmatpush1.msra.mxu0 %v475
        %508 = vmatprep.subr.mxu0 0.0
        %509 = vmatpush1.msra.mxu0 %v476
        %510 = vmatprep.subr.mxu0 0.0
        %511 = vmatpush1.msra.mxu0 %v477
        %512 = vmatprep.subr.mxu0 0.0
        %513 = vmatpush1.msra.mxu0 %v478
        %514 = vmatprep.subr.mxu0 0.0
        %515 = vmatpush1.msra.mxu0 %v479
        %516 = vmatprep.subr.mxu0 0.0
        %517 = vmatpush1.msra.mxu0 %v480
        %518 = vmatprep.subr.mxu0 0.0
        %519 = vmatpush1.msra.mxu0 %v481
        %520 = vmatprep.subr.mxu0 0.0
        %521 = vmatpush1.msra.mxu0 %v482
        %522 = vmatprep.subr.mxu0 0.0
        %523 = vmatpush1.msra.mxu0 0.0
        %524 = vmatprep.subr.mxu0 0.0
        %525 = vmatpush1.msra.mxu0 0.0
        %526 = vmatprep.subr.mxu0 0.0
        %527 = vmatpush1.msra.mxu0 0.0
        %528 = vmatprep.subr.mxu0 0.0
        %529 = vmatpush1.msra.mxu0 0.0
        %530 = vmatprep.subr.mxu0 0.0
        %531 = vmatpush1.msra.mxu0 0.0
        %532 = vmatprep.subr.mxu0 0.0
        %533 = vmatpush1.msra.mxu0 0.0
        %534 = vmatprep.subr.mxu0 0.0
        %535 = vmatpush1.msra.mxu0 0.0
        %536 = vmatprep.subr.mxu0 0.0
        %537 = vmatpush1.msra.mxu0 0.0
        %538 = vmatprep.subr.mxu0 0.0
        %539 = vmatpush1.msra.mxu0 0.0
        %540 = vmatprep.subr.mxu0 0.0
        %541 = vmatpush1.msra.mxu0 0.0
        %542 = vmatprep.subr.mxu0 0.0
        %543 = vmatpush1.msra.mxu0 0.0
        %544 = vmatprep.subr.mxu0 0.0
        %545 = vmatpush1.msra.mxu0 0.0
        %546 = vmatprep.subr.mxu0 0.0
        %547 = vmatpush1.msra.mxu0 0.0
        %548 = vmatprep.subr.mxu0 0.0
        %549 = vmatpush1.msra.mxu0 0.0
        %550 = vmatprep.subr.mxu0 0.0
        %551 = vmatpush1.msra.mxu0 0.0
        %552 = vmatprep.subr.mxu0 0.0
        %553 = vmatpush1.msra.mxu0 0.0
        %554 = vmatprep.mubr.f32.mxu0 0.0
        %555 = vmatmul.mubr.f32.gmra.mrb[0].mxu0 %v459
        %v556 = vpop.f32.mrb[0].mxu0
        %v557 = vadd.f32 %v488, %v556
        %v558 = vpop.f32.mrb[0].mxu0
        %559 = vmatprep.mubr.f32.mxu0 0.0
        %560 = vmatmul.mubr.f32.gmra.mrb[0].mxu0 %v460
        %v561 = vpop.f32.mrb[0].mxu0
        %v562 = vadd.f32 %v488, %v561
        %v563 = vpop.f32.mrb[0].mxu0
        %564 = vmatprep.mubr.f32.mxu0 0.0
        %565 = vmatmul.mubr.f32.gmra.mrb[0].mxu0 %v461
        %v566 = vpop.f32.mrb[0].mxu0
        %v567 = vadd.f32 %v488, %v566
        %v568 = vpop.f32.mrb[0].mxu0
        %569 = vmatprep.mubr.f32.mxu0 0.0
        %570 = vmatmul.mubr.f32.gmra.mrb[0].mxu0 %v462
        %v571 = vpop.f32.mrb[0].mxu0
        %v572 = vadd.f32 %v488, %v571
        %v573 = vpop.f32.mrb[0].mxu0
        %574 = vmatprep.mubr.f32.mxu0 0.0
        %575 = vmatmul.mubr.f32.gmra.mrb[0].mxu0 %v463
        %v576 = vpop.f32.mrb[0].mxu0
        %v577 = vadd.f32 %v488, %v576
        %v578 = vpop.f32.mrb[0].mxu0
        %579 = vmatprep.mubr.f32.mxu0 0.0
        %580 = vmatmul.mubr.f32.gmra.mrb[0].mxu0 %v464
        %v581 = vpop.f32.mrb[0].mxu0
        %v582 = vadd.f32 %v488, %v581
        %v583 = vpop.f32.mrb[0].mxu0
        %584 = vmatprep.mubr.f32.mxu0 0.0
        %585 = vmatmul.mubr.f32.gmra.mrb[0].mxu0 %v465
        %v586 = vpop.f32.mrb[0].mxu0
        %v587 = vadd.f32 %v488, %v586
        %v588 = vpop.f32.mrb[0].mxu0
        %589 = vmatprep.mubr.f32.mxu0 0.0
        %590 = vmatmul.mubr.f32.gmra.mrb[0].mxu0 %v466
        %v591 = vpop.f32.mrb[0].mxu0
        %v592 = vadd.f32 %v488, %v591
        %v593 = vpop.f32.mrb[0].mxu0
        %594 = vdwg.mxu0
        %v595 = vld [vmem:[#allocation7] sm:$0xff]
        %v596 = vld [vmem:[#allocation7 + $0x8] sm:$0xff]
        %v597 = vld [vmem:[#allocation7 + $0x10] sm:$0xff]
        %v598 = vld [vmem:[#allocation7 + $0x18] sm:$0xff]
        %v599 = vld [vmem:[#allocation7 + $0x20] sm:$0xff]
        %v600 = vld [vmem:[#allocation7 + $0x28] sm:$0xff]
        %v601 = vld [vmem:[#allocation7 + $0x30] sm:$0xff]
        %v602 = vld [vmem:[#allocation7 + $0x38] sm:$0xff]
        %v603 = vld [vmem:[#allocation7 + $0x40] sm:$0xff]
        %v604 = vld [vmem:[#allocation7 + $0x48] sm:$0xff]
        %v605 = vld [vmem:[#allocation7 + $0x50] sm:$0xff]
        %v606 = vld [vmem:[#allocation7 + $0x58] sm:$0xff]
        %v607 = vld [vmem:[#allocation7 + $0x60] sm:$0xff]
        %v608 = vld [vmem:[#allocation7 + $0x68] sm:$0xff]
        %v609 = vld [vmem:[#allocation7 + $0x70] sm:$0xff]
        %v610 = vld [vmem:[#allocation7 + $0x78] sm:$0xff]
        %v611 = vld [vmem:[%s452] sm:$0x1]
        %v613 = vlaneseq
        %v614 = vshrl.u32 %v613, 7
        %v615 = vsub.s32 0, %v614
        %v616 = vrot.slane %v611, %v615
        %618 = vmatprep.subr.mxu0 0.0
        %619 = vmatpush1.msra.mxu0 %v595
        %620 = vmatprep.subr.mxu0 0.0
        %621 = vmatpush1.msra.mxu0 %v596
        %622 = vmatprep.subr.mxu0 0.0
        %623 = vmatpush1.msra.mxu0 %v597
        %624 = vmatprep.subr.mxu0 0.0
        %625 = vmatpush1.msra.mxu0 %v598
        %626 = vmatprep.subr.mxu0 0.0
        %627 = vmatpush1.msra.mxu0 %v599
        %628 = vmatprep.subr.mxu0 0.0
        %629 = vmatpush1.msra.mxu0 %v600
        %630 = vmatprep.subr.mxu0 0.0
        %631 = vmatpush1.msra.mxu0 %v601
        %632 = vmatprep.subr.mxu0 0.0
        %633 = vmatpush1.msra.mxu0 %v602
        %634 = vmatprep.subr.mxu0 0.0
        %635 = vmatpush1.msra.mxu0 %v603
        %636 = vmatprep.subr.mxu0 0.0
        %637 = vmatpush1.msra.mxu0 %v604
        %638 = vmatprep.subr.mxu0 0.0
        %639 = vmatpush1.msra.mxu0 %v605
        %640 = vmatprep.subr.mxu0 0.0
        %641 = vmatpush1.msra.mxu0 %v606
        %642 = vmatprep.subr.mxu0 0.0
        %643 = vmatpush1.msra.mxu0 %v607
        %644 = vmatprep.subr.mxu0 0.0
        %645 = vmatpush1.msra.mxu0 %v608
        %646 = vmatprep.subr.mxu0 0.0
        %647 = vmatpush1.msra.mxu0 %v609
        %648 = vmatprep.subr.mxu0 0.0
        %649 = vmatpush1.msra.mxu0 %v610
        %650 = vmatprep.subr.mxu0 0.0
        %651 = vmatpush1.msra.mxu0 0.0
        %652 = vmatprep.subr.mxu0 0.0
        %653 = vmatpush1.msra.mxu0 0.0
        %654 = vmatprep.subr.mxu0 0.0
        %655 = vmatpush1.msra.mxu0 0.0
        %656 = vmatprep.subr.mxu0 0.0
        %657 = vmatpush1.msra.mxu0 0.0
        %658 = vmatprep.subr.mxu0 0.0
        %659 = vmatpush1.msra.mxu0 0.0
        %660 = vmatprep.subr.mxu0 0.0
        %661 = vmatpush1.msra.mxu0 0.0
        %662 = vmatprep.subr.mxu0 0.0
        %663 = vmatpush1.msra.mxu0 0.0
        %664 = vmatprep.subr.mxu0 0.0
        %665 = vmatpush1.msra.mxu0 0.0
        %666 = vmatprep.subr.mxu0 0.0
        %667 = vmatpush1.msra.mxu0 0.0
        %668 = vmatprep.subr.mxu0 0.0
        %669 = vmatpush1.msra.mxu0 0.0
        %670 = vmatprep.subr.mxu0 0.0
        %671 = vmatpush1.msra.mxu0 0.0
        %672 = vmatprep.subr.mxu0 0.0
        %673 = vmatpush1.msra.mxu0 0.0
        %674 = vmatprep.subr.mxu0 0.0
        %675 = vmatpush1.msra.mxu0 0.0
        %676 = vmatprep.subr.mxu0 0.0
        %677 = vmatpush1.msra.mxu0 0.0
        %678 = vmatprep.subr.mxu0 0.0
        %679 = vmatpush1.msra.mxu0 0.0
        %680 = vmatprep.subr.mxu0 0.0
        %681 = vmatpush1.msra.mxu0 0.0
        %682 = vmatprep.mubr.f32.mxu0 0.0
        %683 = vmatmul.mubr.f32.gmra.mrb[0].mxu0 %v459
        %v684 = vpop.f32.mrb[0].mxu0
        %v685 = vadd.f32 %v616, %v684
        %v686 = vpop.f32.mrb[0].mxu0
        %687 = vmatprep.mubr.f32.mxu0 0.0
        %688 = vmatmul.mubr.f32.gmra.mrb[0].mxu0 %v460
        %v689 = vpop.f32.mrb[0].mxu0
        %v690 = vadd.f32 %v616, %v689
        %v691 = vpop.f32.mrb[0].mxu0
        %692 = vmatprep.mubr.f32.mxu0 0.0
        %693 = vmatmul.mubr.f32.gmra.mrb[0].mxu0 %v461
        %v694 = vpop.f32.mrb[0].mxu0
        %v695 = vadd.f32 %v616, %v694
        %v696 = vpop.f32.mrb[0].mxu0
        %697 = vmatprep.mubr.f32.mxu0 0.0
        %698 = vmatmul.mubr.f32.gmra.mrb[0].mxu0 %v462
        %v699 = vpop.f32.mrb[0].mxu0
        %v700 = vadd.f32 %v616, %v699
        %v701 = vpop.f32.mrb[0].mxu0
        %702 = vmatprep.mubr.f32.mxu0 0.0
        %703 = vmatmul.mubr.f32.gmra.mrb[0].mxu0 %v463
        %v704 = vpop.f32.mrb[0].mxu0
        %v705 = vadd.f32 %v616, %v704
        %v706 = vpop.f32.mrb[0].mxu0
        %707 = vmatprep.mubr.f32.mxu0 0.0
        %708 = vmatmul.mubr.f32.gmra.mrb[0].mxu0 %v464
        %v709 = vpop.f32.mrb[0].mxu0
        %v710 = vadd.f32 %v616, %v709
        %v711 = vpop.f32.mrb[0].mxu0
        %712 = vmatprep.mubr.f32.mxu0 0.0
        %713 = vmatmul.mubr.f32.gmra.mrb[0].mxu0 %v465
        %v714 = vpop.f32.mrb[0].mxu0
        %v715 = vadd.f32 %v616, %v714
        %v716 = vpop.f32.mrb[0].mxu0
        %717 = vmatprep.mubr.f32.mxu0 0.0
        %718 = vmatmul.mubr.f32.gmra.mrb[0].mxu0 %v466
        %v719 = vpop.f32.mrb[0].mxu0
        %v720 = vadd.f32 %v616, %v719
        %v721 = vpop.f32.mrb[0].mxu0
        %722 = vdwg.mxu0
        %v723 = vld [vmem:[#allocation8] sm:$0xff]
        %v724 = vld [vmem:[#allocation8 + $0x8] sm:$0xff]
        %v725 = vld [vmem:[#allocation8 + $0x10] sm:$0xff]
        %v726 = vld [vmem:[#allocation8 + $0x18] sm:$0xff]
        %v727 = vld [vmem:[#allocation8 + $0x20] sm:$0xff]
        %v728 = vld [vmem:[#allocation8 + $0x28] sm:$0xff]
        %v729 = vld [vmem:[#allocation8 + $0x30] sm:$0xff]
        %v730 = vld [vmem:[#allocation8 + $0x38] sm:$0xff]
        %v731 = vld [vmem:[#allocation8 + $0x40] sm:$0xff]
        %v732 = vld [vmem:[#allocation8 + $0x48] sm:$0xff]
        %v733 = vld [vmem:[#allocation8 + $0x50] sm:$0xff]
        %v734 = vld [vmem:[#allocation8 + $0x58] sm:$0xff]
        %v735 = vld [vmem:[#allocation8 + $0x60] sm:$0xff]
        %v736 = vld [vmem:[#allocation8 + $0x68] sm:$0xff]
        %v737 = vld [vmem:[#allocation8 + $0x70] sm:$0xff]
        %v738 = vld [vmem:[#allocation8 + $0x78] sm:$0xff]
        %v739 = vld [vmem:[%s455] sm:$0x1]
        %v741 = vlaneseq
        %v742 = vshrl.u32 %v741, 7
        %v743 = vsub.s32 0, %v742
        %v744 = vrot.slane %v739, %v743
        %746 = vmatprep.subr.mxu0 0.0
        %747 = vmatpush1.msra.mxu0 %v723
        %748 = vmatprep.subr.mxu0 0.0
        %749 = vmatpush1.msra.mxu0 %v724
        %750 = vmatprep.subr.mxu0 0.0
        %751 = vmatpush1.msra.mxu0 %v725
        %752 = vmatprep.subr.mxu0 0.0
        %753 = vmatpush1.msra.mxu0 %v726
        %754 = vmatprep.subr.mxu0 0.0
        %755 = vmatpush1.msra.mxu0 %v727
        %756 = vmatprep.subr.mxu0 0.0
        %757 = vmatpush1.msra.mxu0 %v728
        %758 = vmatprep.subr.mxu0 0.0
        %759 = vmatpush1.msra.mxu0 %v729
        %760 = vmatprep.subr.mxu0 0.0
        %761 = vmatpush1.msra.mxu0 %v730
        %762 = vmatprep.subr.mxu0 0.0
        %763 = vmatpush1.msra.mxu0 %v731
        %764 = vmatprep.subr.mxu0 0.0
        %765 = vmatpush1.msra.mxu0 %v732
        %766 = vmatprep.subr.mxu0 0.0
        %767 = vmatpush1.msra.mxu0 %v733
        %768 = vmatprep.subr.mxu0 0.0
        %769 = vmatpush1.msra.mxu0 %v734
        %770 = vmatprep.subr.mxu0 0.0
        %771 = vmatpush1.msra.mxu0 %v735
        %772 = vmatprep.subr.mxu0 0.0
        %773 = vmatpush1.msra.mxu0 %v736
        %774 = vmatprep.subr.mxu0 0.0
        %775 = vmatpush1.msra.mxu0 %v737
        %776 = vmatprep.subr.mxu0 0.0
        %777 = vmatpush1.msra.mxu0 %v738
        %778 = vmatprep.subr.mxu0 0.0
        %779 = vmatpush1.msra.mxu0 0.0
        %780 = vmatprep.subr.mxu0 0.0
        %781 = vmatpush1.msra.mxu0 0.0
        %782 = vmatprep.subr.mxu0 0.0
        %783 = vmatpush1.msra.mxu0 0.0
        %784 = vmatprep.subr.mxu0 0.0
        %785 = vmatpush1.msra.mxu0 0.0
        %786 = vmatprep.subr.mxu0 0.0
        %787 = vmatpush1.msra.mxu0 0.0
        %788 = vmatprep.subr.mxu0 0.0
        %789 = vmatpush1.msra.mxu0 0.0
        %790 = vmatprep.subr.mxu0 0.0
        %791 = vmatpush1.msra.mxu0 0.0
        %792 = vmatprep.subr.mxu0 0.0
        %793 = vmatpush1.msra.mxu0 0.0
        %794 = vmatprep.subr.mxu0 0.0
        %795 = vmatpush1.msra.mxu0 0.0
        %796 = vmatprep.subr.mxu0 0.0
        %797 = vmatpush1.msra.mxu0 0.0
        %798 = vmatprep.subr.mxu0 0.0
        %799 = vmatpush1.msra.mxu0 0.0
        %800 = vmatprep.subr.mxu0 0.0
        %801 = vmatpush1.msra.mxu0 0.0
        %802 = vmatprep.subr.mxu0 0.0
        %803 = vmatpush1.msra.mxu0 0.0
        %804 = vmatprep.subr.mxu0 0.0
        %805 = vmatpush1.msra.mxu0 0.0
        %806 = vmatprep.subr.mxu0 0.0
        %807 = vmatpush1.msra.mxu0 0.0
        %808 = vmatprep.subr.mxu0 0.0
        %809 = vmatpush1.msra.mxu0 0.0
        %810 = vmatprep.mubr.f32.mxu0 0.0
        %811 = vmatmul.mubr.f32.gmra.mrb[0].mxu0 %v459
        %v812 = vpop.f32.mrb[0].mxu0
        %v813 = vadd.f32 %v744, %v812
        %v814 = vpop.f32.mrb[0].mxu0
        %815 = vmatprep.mubr.f32.mxu0 0.0
        %816 = vmatmul.mubr.f32.gmra.mrb[0].mxu0 %v460
        %v817 = vpop.f32.mrb[0].mxu0
        %v818 = vadd.f32 %v744, %v817
        %v819 = vpop.f32.mrb[0].mxu0
        %820 = vmatprep.mubr.f32.mxu0 0.0
        %821 = vmatmul.mubr.f32.gmra.mrb[0].mxu0 %v461
        %v822 = vpop.f32.mrb[0].mxu0
        %v823 = vadd.f32 %v744, %v822
        %v824 = vpop.f32.mrb[0].mxu0
        %825 = vmatprep.mubr.f32.mxu0 0.0
        %826 = vmatmul.mubr.f32.gmra.mrb[0].mxu0 %v462
        %v827 = vpop.f32.mrb[0].mxu0
        %v828 = vadd.f32 %v744, %v827
        %v829 = vpop.f32.mrb[0].mxu0
        %830 = vmatprep.mubr.f32.mxu0 0.0
        %831 = vmatmul.mubr.f32.gmra.mrb[0].mxu0 %v463
        %v832 = vpop.f32.mrb[0].mxu0
        %v833 = vadd.f32 %v744, %v832
        %v834 = vpop.f32.mrb[0].mxu0
        %835 = vmatprep.mubr.f32.mxu0 0.0
        %836 = vmatmul.mubr.f32.gmra.mrb[0].mxu0 %v464
        %v837 = vpop.f32.mrb[0].mxu0
        %v838 = vadd.f32 %v744, %v837
        %v839 = vpop.f32.mrb[0].mxu0
        %840 = vmatprep.mubr.f32.mxu0 0.0
        %841 = vmatmul.mubr.f32.gmra.mrb[0].mxu0 %v465
        %v842 = vpop.f32.mrb[0].mxu0
        %v843 = vadd.f32 %v744, %v842
        %v844 = vpop.f32.mrb[0].mxu0
        %845 = vmatprep.mubr.f32.mxu0 0.0
        %846 = vmatmul.mubr.f32.gmra.mrb[0].mxu0 %v466
        %v847 = vpop.f32.mrb[0].mxu0
        %v848 = vadd.f32 %v744, %v847
        %v849 = vpop.f32.mrb[0].mxu0
        %850 = vdwg.mxu0
        %v851 = vld [vmem:[%s458] sm:$0x1]
        %vm852 = vcmask 523264
        %v854 = vsel %vm852, %v557, 0
        %v857 = vsel %vm852, %v562, 0
        %v860 = vsel %vm852, %v567, 0
        %v863 = vsel %vm852, %v572, 0
        %v866 = vsel %vm852, %v577, 0
        %v869 = vsel %vm852, %v582, 0
        %v872 = vsel %vm852, %v587, 0
        %v875 = vsel %vm852, %v592, 0
        %v878 = vsel %vm852, %v685, 0
        %v881 = vsel %vm852, %v690, 0
        %v884 = vsel %vm852, %v695, 0
        %v887 = vsel %vm852, %v700, 0
        %v890 = vsel %vm852, %v705, 0
        %v893 = vsel %vm852, %v710, 0
        %v896 = vsel %vm852, %v715, 0
        %v899 = vsel %vm852, %v720, 0
        %901 = vmatprep.subr.mxu0 0.0
        %902 = vmatpush1.xpose.msra.mxu0 %v878
        %903 = vmatprep.subr.mxu0 0.0
        %904 = vmatpush1.xpose.msra.mxu0 %v881
        %905 = vmatprep.subr.mxu0 0.0
        %906 = vmatpush1.xpose.msra.mxu0 %v884
        %907 = vmatprep.subr.mxu0 0.0
        %908 = vmatpush1.xpose.msra.mxu0 %v887
        %909 = vmatprep.subr.mxu0 0.0
        %910 = vmatpush1.xpose.msra.mxu0 %v890
        %911 = vmatprep.subr.mxu0 0.0
        %912 = vmatpush1.xpose.msra.mxu0 %v893
        %913 = vmatprep.subr.mxu0 0.0
        %914 = vmatpush1.xpose.msra.mxu0 %v896
        %915 = vmatprep.subr.mxu0 0.0
        %916 = vmatpush1.xpose.msra.mxu0 %v899
        %917 = vmatprep.subr.mxu0 0.0
        %918 = vmatpush1.xpose.msra.mxu0 0.0
        %919 = vmatprep.subr.mxu0 0.0
        %920 = vmatpush1.xpose.msra.mxu0 0.0
        %921 = vmatprep.subr.mxu0 0.0
        %922 = vmatpush1.xpose.msra.mxu0 0.0
        %923 = vmatprep.subr.mxu0 0.0
        %924 = vmatpush1.xpose.msra.mxu0 0.0
        %925 = vmatprep.subr.mxu0 0.0
        %926 = vmatpush1.xpose.msra.mxu0 0.0
        %927 = vmatprep.subr.mxu0 0.0
        %928 = vmatpush1.xpose.msra.mxu0 0.0
        %929 = vmatprep.subr.mxu0 0.0
        %930 = vmatpush1.xpose.msra.mxu0 0.0
        %931 = vmatprep.subr.mxu0 0.0
        %932 = vmatpush1.xpose.msra.mxu0 0.0
        %933 = vmatprep.subr.mxu0 0.0
        %934 = vmatpush1.xpose.msra.mxu0 0.0
        %935 = vmatprep.subr.mxu0 0.0
        %936 = vmatpush1.xpose.msra.mxu0 0.0
        %937 = vmatprep.subr.mxu0 0.0
        %938 = vmatpush1.xpose.msra.mxu0 0.0
        %939 = vmatprep.subr.mxu0 0.0
        %940 = vmatpush1.xpose.msra.mxu0 0.0
        %941 = vmatprep.subr.mxu0 0.0
        %942 = vmatpush1.xpose.msra.mxu0 0.0
        %943 = vmatprep.subr.mxu0 0.0
        %944 = vmatpush1.xpose.msra.mxu0 0.0
        %945 = vmatprep.subr.mxu0 0.0
        %946 = vmatpush1.xpose.msra.mxu0 0.0
        %947 = vmatprep.subr.mxu0 0.0
        %948 = vmatpush1.xpose.msra.mxu0 0.0
        %949 = vmatprep.subr.mxu0 0.0
        %950 = vmatpush1.xpose.msra.mxu0 0.0
        %951 = vmatprep.subr.mxu0 0.0
        %952 = vmatpush1.xpose.msra.mxu0 0.0
        %953 = vmatprep.subr.mxu0 0.0
        %954 = vmatpush1.xpose.msra.mxu0 0.0
        %955 = vmatprep.subr.mxu0 0.0
        %956 = vmatpush1.xpose.msra.mxu0 0.0
        %957 = vmatprep.subr.mxu0 0.0
        %958 = vmatpush1.xpose.msra.mxu0 0.0
        %959 = vmatprep.subr.mxu0 0.0
        %960 = vmatpush1.xpose.msra.mxu0 0.0
        %961 = vmatprep.subr.mxu0 0.0
        %962 = vmatpush1.xpose.msra.mxu0 0.0
        %963 = vmatprep.subr.mxu0 0.0
        %964 = vmatpush1.xpose.msra.mxu0 0.0
        %965 = vmatprep.mubr.f32.mxu0 0.0
        %966 = vmatmul.mubr.f32.gmra.mrb[0].mxu0 %v854
        %v967 = vpop.f32.mrb[0].mxu0
        %v968 = vadd.f32 0.0, %v967
        %v969 = vpop.f32.mrb[0].mxu0
        %970 = vmatprep.mubr.f32.mxu0 0.0
        %971 = vmatmul.mubr.f32.gmra.mrb[0].mxu0 %v857
        %v972 = vpop.f32.mrb[0].mxu0
        %v973 = vadd.f32 0.0, %v972
        %v974 = vpop.f32.mrb[0].mxu0
        %975 = vmatprep.mubr.f32.mxu0 0.0
        %976 = vmatmul.mubr.f32.gmra.mrb[0].mxu0 %v860
        %v977 = vpop.f32.mrb[0].mxu0
        %v978 = vadd.f32 0.0, %v977
        %v979 = vpop.f32.mrb[0].mxu0
        %980 = vmatprep.mubr.f32.mxu0 0.0
        %981 = vmatmul.mubr.f32.gmra.mrb[0].mxu0 %v863
        %v982 = vpop.f32.mrb[0].mxu0
        %v983 = vadd.f32 0.0, %v982
        %v984 = vpop.f32.mrb[0].mxu0
        %985 = vmatprep.mubr.f32.mxu0 0.0
        %986 = vmatmul.mubr.f32.gmra.mrb[0].mxu0 %v866
        %v987 = vpop.f32.mrb[0].mxu0
        %v988 = vadd.f32 0.0, %v987
        %v989 = vpop.f32.mrb[0].mxu0
        %990 = vmatprep.mubr.f32.mxu0 0.0
        %991 = vmatmul.mubr.f32.gmra.mrb[0].mxu0 %v869
        %v992 = vpop.f32.mrb[0].mxu0
        %v993 = vadd.f32 0.0, %v992
        %v994 = vpop.f32.mrb[0].mxu0
        %995 = vmatprep.mubr.f32.mxu0 0.0
        %996 = vmatmul.mubr.f32.gmra.mrb[0].mxu0 %v872
        %v997 = vpop.f32.mrb[0].mxu0
        %v998 = vadd.f32 0.0, %v997
        %v999 = vpop.f32.mrb[0].mxu0
        %1000 = vmatprep.mubr.f32.mxu0 0.0
        %1001 = vmatmul.mubr.f32.gmra.mrb[0].mxu0 %v875
        %v1002 = vpop.f32.mrb[0].mxu0
        %v1003 = vadd.f32 0.0, %v1002
        %v1004 = vpop.f32.mrb[0].mxu0
        %1005 = vdwg.mxu0
        %v1006 = vmul.f32 %v968, 0.125
        %v1007 = vmul.f32 %v973, 0.125
        %v1008 = vmul.f32 %v978, 0.125
        %v1009 = vmul.f32 %v983, 0.125
        %v1010 = vmul.f32 %v988, 0.125
        %v1011 = vmul.f32 %v993, 0.125
        %v1012 = vmul.f32 %v998, 0.125
        %v1013 = vmul.f32 %v1003, 0.125
        %v1015 = vlaneseq
        %v1016 = vshrl.u32 %v1015, 7
        %v1017 = vsub.s32 0, %v1016
        %v1018 = vrot.slane %v851, %v1017
        %v1020 = vadd.f32 %v1006, %v1018
        %v1021 = vadd.f32 %v1007, %v1018
        %v1022 = vadd.f32 %v1008, %v1018
        %v1023 = vadd.f32 %v1009, %v1018
        %v1024 = vadd.f32 %v1010, %v1018
        %v1025 = vadd.f32 %v1011, %v1018
        %v1026 = vadd.f32 %v1012, %v1018
        %v1027 = vadd.f32 %v1013, %v1018
        %v1028 = vsel %vm852, %v1020, -inf
        %1029 = vmax.xlane.f32.xlu0 %v1028
        %v1030 = vpop.xlane.xlu0 %1029
        %v1031 = vsel %vm852, %v1021, -inf
        %1032 = vmax.xlane.f32.xlu0 %v1031
        %v1033 = vpop.xlane.xlu0 %1032
        %v1034 = vsel %vm852, %v1022, -inf
        %1035 = vmax.xlane.f32.xlu0 %v1034
        %v1036 = vpop.xlane.xlu0 %1035
        %v1037 = vsel %vm852, %v1023, -inf
        %1038 = vmax.xlane.f32.xlu0 %v1037
        %v1039 = vpop.xlane.xlu0 %1038
        %v1040 = vsel %vm852, %v1024, -inf
        %1041 = vmax.xlane.f32.xlu0 %v1040
        %v1042 = vpop.xlane.xlu0 %1041
        %v1043 = vsel %vm852, %v1025, -inf
        %1044 = vmax.xlane.f32.xlu0 %v1043
        %v1045 = vpop.xlane.xlu0 %1044
        %v1046 = vsel %vm852, %v1026, -inf
        %1047 = vmax.xlane.f32.xlu0 %v1046
        %v1048 = vpop.xlane.xlu0 %1047
        %v1049 = vsel %vm852, %v1027, -inf
        %1050 = vmax.xlane.f32.xlu0 %v1049
        %v1051 = vpop.xlane.xlu0 %1050
        %v1052 = vsub.f32 %v1020, %v1030
        %v1053 = vsub.f32 %v1021, %v1033
        %v1054 = vsub.f32 %v1022, %v1036
        %v1055 = vsub.f32 %v1023, %v1039
        %v1056 = vsub.f32 %v1024, %v1042
        %v1057 = vsub.f32 %v1025, %v1045
        %v1058 = vsub.f32 %v1026, %v1048
        %v1059 = vsub.f32 %v1027, %v1051
        %v1060 = vmul.f32 %v1052, 1.442695
        %v1061 = vpow.pop %v1060
        %v1062 = vmul.f32 %v1053, 1.442695
        %v1063 = vpow.pop %v1062
        %v1064 = vmul.f32 %v1054, 1.442695
        %v1065 = vpow.pop %v1064
        %v1066 = vmul.f32 %v1055, 1.442695
        %v1067 = vpow.pop %v1066
        %v1068 = vmul.f32 %v1056, 1.442695
        %v1069 = vpow.pop %v1068
        %v1070 = vmul.f32 %v1057, 1.442695
        %v1071 = vpow.pop %v1070
        %v1072 = vmul.f32 %v1058, 1.442695
        %v1073 = vpow.pop %v1072
        %v1074 = vmul.f32 %v1059, 1.442695
        %v1075 = vpow.pop %v1074
        %v1076 = vsel %vm852, %v1061, 0.0
        %1077 = vadd.xlane.f32.xlu0 %v1076
        %v1078 = vpop.xlane.xlu0 %1077
        %v1079 = vsel %vm852, %v1063, 0.0
        %1080 = vadd.xlane.f32.xlu0 %v1079
        %v1081 = vpop.xlane.xlu0 %1080
        %v1082 = vsel %vm852, %v1065, 0.0
        %1083 = vadd.xlane.f32.xlu0 %v1082
        %v1084 = vpop.xlane.xlu0 %1083
        %v1085 = vsel %vm852, %v1067, 0.0
        %1086 = vadd.xlane.f32.xlu0 %v1085
        %v1087 = vpop.xlane.xlu0 %1086
        %v1088 = vsel %vm852, %v1069, 0.0
        %1089 = vadd.xlane.f32.xlu0 %v1088
        %v1090 = vpop.xlane.xlu0 %1089
        %v1091 = vsel %vm852, %v1071, 0.0
        %1092 = vadd.xlane.f32.xlu0 %v1091
        %v1093 = vpop.xlane.xlu0 %1092
        %v1094 = vsel %vm852, %v1073, 0.0
        %1095 = vadd.xlane.f32.xlu0 %v1094
        %v1096 = vpop.xlane.xlu0 %1095
        %v1097 = vsel %vm852, %v1075, 0.0
        %1098 = vadd.xlane.f32.xlu0 %v1097
        %v1099 = vpop.xlane.xlu0 %1098
        %v1101 = vsel %vm852, %v1061, 0
        %v1104 = vsel %vm852, %v1063, 0
        %v1107 = vsel %vm852, %v1065, 0
        %v1110 = vsel %vm852, %v1067, 0
        %v1113 = vsel %vm852, %v1069, 0
        %v1116 = vsel %vm852, %v1071, 0
        %v1119 = vsel %vm852, %v1073, 0
        %v1122 = vsel %vm852, %v1075, 0
        %1124 = vmatprep.subr.mxu0 0.0
        %1125 = vmatpush1.msra.mxu0 %v813
        %1126 = vmatprep.subr.mxu0 0.0
        %1127 = vmatpush1.msra.mxu0 %v818
        %1128 = vmatprep.subr.mxu0 0.0
        %1129 = vmatpush1.msra.mxu0 %v823
        %1130 = vmatprep.subr.mxu0 0.0
        %1131 = vmatpush1.msra.mxu0 %v828
        %1132 = vmatprep.subr.mxu0 0.0
        %1133 = vmatpush1.msra.mxu0 %v833
        %1134 = vmatprep.subr.mxu0 0.0
        %1135 = vmatpush1.msra.mxu0 %v838
        %1136 = vmatprep.subr.mxu0 0.0
        %1137 = vmatpush1.msra.mxu0 %v843
        %1138 = vmatprep.subr.mxu0 0.0
        %1139 = vmatpush1.msra.mxu0 %v848
        %1140 = vmatprep.subr.mxu0 0.0
        %1141 = vmatpush1.msra.mxu0 0.0
        %1142 = vmatprep.subr.mxu0 0.0
        %1143 = vmatpush1.msra.mxu0 0.0
        %1144 = vmatprep.subr.mxu0 0.0
        %1145 = vmatpush1.msra.mxu0 0.0
        %1146 = vmatprep.subr.mxu0 0.0
        %1147 = vmatpush1.msra.mxu0 0.0
        %1148 = vmatprep.subr.mxu0 0.0
        %1149 = vmatpush1.msra.mxu0 0.0
        %1150 = vmatprep.subr.mxu0 0.0
        %1151 = vmatpush1.msra.mxu0 0.0
        %1152 = vmatprep.subr.mxu0 0.0
        %1153 = vmatpush1.msra.mxu0 0.0
        %1154 = vmatprep.subr.mxu0 0.0
        %1155 = vmatpush1.msra.mxu0 0.0
        %1156 = vmatprep.subr.mxu0 0.0
        %1157 = vmatpush1.msra.mxu0 0.0
        %1158 = vmatprep.subr.mxu0 0.0
        %1159 = vmatpush1.msra.mxu0 0.0
        %1160 = vmatprep.subr.mxu0 0.0
        %1161 = vmatpush1.msra.mxu0 0.0
        %1162 = vmatprep.subr.mxu0 0.0
        %1163 = vmatpush1.msra.mxu0 0.0
        %1164 = vmatprep.subr.mxu0 0.0
        %1165 = vmatpush1.msra.mxu0 0.0
        %1166 = vmatprep.subr.mxu0 0.0
        %1167 = vmatpush1.msra.mxu0 0.0
        %1168 = vmatprep.subr.mxu0 0.0
        %1169 = vmatpush1.msra.mxu0 0.0
        %1170 = vmatprep.subr.mxu0 0.0
        %1171 = vmatpush1.msra.mxu0 0.0
        %1172 = vmatprep.subr.mxu0 0.0
        %1173 = vmatpush1.msra.mxu0 0.0
        %1174 = vmatprep.subr.mxu0 0.0
        %1175 = vmatpush1.msra.mxu0 0.0
        %1176 = vmatprep.subr.mxu0 0.0
        %1177 = vmatpush1.msra.mxu0 0.0
        %1178 = vmatprep.subr.mxu0 0.0
        %1179 = vmatpush1.msra.mxu0 0.0
        %1180 = vmatprep.subr.mxu0 0.0
        %1181 = vmatpush1.msra.mxu0 0.0
        %1182 = vmatprep.subr.mxu0 0.0
        %1183 = vmatpush1.msra.mxu0 0.0
        %1184 = vmatprep.subr.mxu0 0.0
        %1185 = vmatpush1.msra.mxu0 0.0
        %1186 = vmatprep.subr.mxu0 0.0
        %1187 = vmatpush1.msra.mxu0 0.0
        %1188 = vmatprep.mubr.f32.mxu0 0.0
        %1189 = vmatmul.mubr.f32.gmra.mrb[0].mxu0 %v1101
        %v1190 = vpop.f32.mrb[0].mxu0
        %v1191 = vadd.f32 0.0, %v1190
        %v1192 = vpop.f32.mrb[0].mxu0
        %1193 = vmatprep.mubr.f32.mxu0 0.0
        %1194 = vmatmul.mubr.f32.gmra.mrb[0].mxu0 %v1104
        %v1195 = vpop.f32.mrb[0].mxu0
        %v1196 = vadd.f32 0.0, %v1195
        %v1197 = vpop.f32.mrb[0].mxu0
        %1198 = vmatprep.mubr.f32.mxu0 0.0
        %1199 = vmatmul.mubr.f32.gmra.mrb[0].mxu0 %v1107
        %v1200 = vpop.f32.mrb[0].mxu0
        %v1201 = vadd.f32 0.0, %v1200
        %v1202 = vpop.f32.mrb[0].mxu0
        %1203 = vmatprep.mubr.f32.mxu0 0.0
        %1204 = vmatmul.mubr.f32.gmra.mrb[0].mxu0 %v1110
        %v1205 = vpop.f32.mrb[0].mxu0
        %v1206 = vadd.f32 0.0, %v1205
        %v1207 = vpop.f32.mrb[0].mxu0
        %1208 = vmatprep.mubr.f32.mxu0 0.0
        %1209 = vmatmul.mubr.f32.gmra.mrb[0].mxu0 %v1113
        %v1210 = vpop.f32.mrb[0].mxu0
        %v1211 = vadd.f32 0.0, %v1210
        %v1212 = vpop.f32.mrb[0].mxu0
        %1213 = vmatprep.mubr.f32.mxu0 0.0
        %1214 = vmatmul.mubr.f32.gmra.mrb[0].mxu0 %v1116
        %v1215 = vpop.f32.mrb[0].mxu0
        %v1216 = vadd.f32 0.0, %v1215
        %v1217 = vpop.f32.mrb[0].mxu0
        %1218 = vmatprep.mubr.f32.mxu0 0.0
        %1219 = vmatmul.mubr.f32.gmra.mrb[0].mxu0 %v1119
        %v1220 = vpop.f32.mrb[0].mxu0
        %v1221 = vadd.f32 0.0, %v1220
        %v1222 = vpop.f32.mrb[0].mxu0
        %1223 = vmatprep.mubr.f32.mxu0 0.0
        %1224 = vmatmul.mubr.f32.gmra.mrb[0].mxu0 %v1122
        %v1225 = vpop.f32.mrb[0].mxu0
        %v1226 = vadd.f32 0.0, %v1225
        %v1227 = vpop.f32.mrb[0].mxu0
        %1228 = vdwg.mxu0
        %v1229 = vrcp.pop %v1078
        %v1230 = vmul.f32 1.0, %v1229
        %v1231 = vrcp.pop %v1081
        %v1232 = vmul.f32 1.0, %v1231
        %v1233 = vrcp.pop %v1084
        %v1234 = vmul.f32 1.0, %v1233
        %v1235 = vrcp.pop %v1087
        %v1236 = vmul.f32 1.0, %v1235
        %v1237 = vrcp.pop %v1090
        %v1238 = vmul.f32 1.0, %v1237
        %v1239 = vrcp.pop %v1093
        %v1240 = vmul.f32 1.0, %v1239
        %v1241 = vrcp.pop %v1096
        %v1242 = vmul.f32 1.0, %v1241
        %v1243 = vrcp.pop %v1099
        %v1244 = vmul.f32 1.0, %v1243
        %v1245 = vmul.f32 %v1191, %v1230
        %v1246 = vmul.f32 %v1196, %v1232
        %v1247 = vmul.f32 %v1201, %v1234
        %v1248 = vmul.f32 %v1206, %v1236
        %v1249 = vmul.f32 %v1211, %v1238
        %v1250 = vmul.f32 %v1216, %v1240
        %v1251 = vmul.f32 %v1221, %v1242
        %v1252 = vmul.f32 %v1226, %v1244
        %1253 = vrot.lane.b32.xlu0 %v557, 64
        %v1254 = vpop.permute.xlu0 %1253
        %1255 = vrot.lane.b32.xlu0 %v562, 64
        %v1256 = vpop.permute.xlu0 %1255
        %1257 = vrot.lane.b32.xlu0 %v567, 64
        %v1258 = vpop.permute.xlu0 %1257
        %1259 = vrot.lane.b32.xlu0 %v572, 64
        %v1260 = vpop.permute.xlu0 %1259
        %1261 = vrot.lane.b32.xlu0 %v577, 64
        %v1262 = vpop.permute.xlu0 %1261
        %1263 = vrot.lane.b32.xlu0 %v582, 64
        %v1264 = vpop.permute.xlu0 %1263
        %1265 = vrot.lane.b32.xlu0 %v587, 64
        %v1266 = vpop.permute.xlu0 %1265
        %1267 = vrot.lane.b32.xlu0 %v592, 64
        %v1268 = vpop.permute.xlu0 %1267
        %1269 = vrot.lane.b32.xlu0 %v685, 64
        %v1270 = vpop.permute.xlu0 %1269
        %1271 = vrot.lane.b32.xlu0 %v690, 64
        %v1272 = vpop.permute.xlu0 %1271
        %1273 = vrot.lane.b32.xlu0 %v695, 64
        %v1274 = vpop.permute.xlu0 %1273
        %1275 = vrot.lane.b32.xlu0 %v700, 64
        %v1276 = vpop.permute.xlu0 %1275
        %1277 = vrot.lane.b32.xlu0 %v705, 64
        %v1278 = vpop.permute.xlu0 %1277
        %1279 = vrot.lane.b32.xlu0 %v710, 64
        %v1280 = vpop.permute.xlu0 %1279
        %1281 = vrot.lane.b32.xlu0 %v715, 64
        %v1282 = vpop.permute.xlu0 %1281
        %1283 = vrot.lane.b32.xlu0 %v720, 64
        %v1284 = vpop.permute.xlu0 %1283
        %v1285 = vsel %vm852, %v1254, 0
        %v1287 = vsel %vm852, %v1256, 0
        %v1289 = vsel %vm852, %v1258, 0
        %v1291 = vsel %vm852, %v1260, 0
        %v1293 = vsel %vm852, %v1262, 0
        %v1295 = vsel %vm852, %v1264, 0
        %v1297 = vsel %vm852, %v1266, 0
        %v1299 = vsel %vm852, %v1268, 0
        %v1301 = vsel %vm852, %v1270, 0
        %v1303 = vsel %vm852, %v1272, 0
        %v1305 = vsel %vm852, %v1274, 0
        %v1307 = vsel %vm852, %v1276, 0
        %v1309 = vsel %vm852, %v1278, 0
        %v1311 = vsel %vm852, %v1280, 0
        %v1313 = vsel %vm852, %v1282, 0
        %v1315 = vsel %vm852, %v1284, 0
        %1317 = vmatprep.subr.mxu0 0.0
        %1318 = vmatpush1.xpose.msra.mxu0 %v1301
        %1319 = vmatprep.subr.mxu0 0.0
        %1320 = vmatpush1.xpose.msra.mxu0 %v1303
        %1321 = vmatprep.subr.mxu0 0.0
        %1322 = vmatpush1.xpose.msra.mxu0 %v1305
        %1323 = vmatprep.subr.mxu0 0.0
        %1324 = vmatpush1.xpose.msra.mxu0 %v1307
        %1325 = vmatprep.subr.mxu0 0.0
        %1326 = vmatpush1.xpose.msra.mxu0 %v1309
        %1327 = vmatprep.subr.mxu0 0.0
        %1328 = vmatpush1.xpose.msra.mxu0 %v1311
        %1329 = vmatprep.subr.mxu0 0.0
        %1330 = vmatpush1.xpose.msra.mxu0 %v1313
        %1331 = vmatprep.subr.mxu0 0.0
        %1332 = vmatpush1.xpose.msra.mxu0 %v1315
        %1333 = vmatprep.subr.mxu0 0.0
        %1334 = vmatpush1.xpose.msra.mxu0 0.0
        %1335 = vmatprep.subr.mxu0 0.0
        %1336 = vmatpush1.xpose.msra.mxu0 0.0
        %1337 = vmatprep.subr.mxu0 0.0
        %1338 = vmatpush1.xpose.msra.mxu0 0.0
        %1339 = vmatprep.subr.mxu0 0.0
        %1340 = vmatpush1.xpose.msra.mxu0 0.0
        %1341 = vmatprep.subr.mxu0 0.0
        %1342 = vmatpush1.xpose.msra.mxu0 0.0
        %1343 = vmatprep.subr.mxu0 0.0
        %1344 = vmatpush1.xpose.msra.mxu0 0.0
        %1345 = vmatprep.subr.mxu0 0.0
        %1346 = vmatpush1.xpose.msra.mxu0 0.0
        %1347 = vmatprep.subr.mxu0 0.0
        %1348 = vmatpush1.xpose.msra.mxu0 0.0
        %1349 = vmatprep.subr.mxu0 0.0
        %1350 = vmatpush1.xpose.msra.mxu0 0.0
        %1351 = vmatprep.subr.mxu0 0.0
        %1352 = vmatpush1.xpose.msra.mxu0 0.0
        %1353 = vmatprep.subr.mxu0 0.0
        %1354 = vmatpush1.xpose.msra.mxu0 0.0
        %1355 = vmatprep.subr.mxu0 0.0
        %1356 = vmatpush1.xpose.msra.mxu0 0.0
        %1357 = vmatprep.subr.mxu0 0.0
        %1358 = vmatpush1.xpose.msra.mxu0 0.0
        %1359 = vmatprep.subr.mxu0 0.0
        %1360 = vmatpush1.xpose.msra.mxu0 0.0
        %1361 = vmatprep.subr.mxu0 0.0
        %1362 = vmatpush1.xpose.msra.mxu0 0.0
        %1363 = vmatprep.subr.mxu0 0.0
        %1364 = vmatpush1.xpose.msra.mxu0 0.0
        %1365 = vmatprep.subr.mxu0 0.0
        %1366 = vmatpush1.xpose.msra.mxu0 0.0
        %1367 = vmatprep.subr.mxu0 0.0
        %1368 = vmatpush1.xpose.msra.mxu0 0.0
        %1369 = vmatprep.subr.mxu0 0.0
        %1370 = vmatpush1.xpose.msra.mxu0 0.0
        %1371 = vmatprep.subr.mxu0 0.0
        %1372 = vmatpush1.xpose.msra.mxu0 0.0
        %1373 = vmatprep.subr.mxu0 0.0
        %1374 = vmatpush1.xpose.msra.mxu0 0.0
        %1375 = vmatprep.subr.mxu0 0.0
        %1376 = vmatpush1.xpose.msra.mxu0 0.0
        %1377 = vmatprep.subr.mxu0 0.0
        %1378 = vmatpush1.xpose.msra.mxu0 0.0
        %1379 = vmatprep.subr.mxu0 0.0
        %1380 = vmatpush1.xpose.msra.mxu0 0.0
        %1381 = vmatprep.mubr.f32.mxu0 0.0
        %1382 = vmatmul.mubr.f32.gmra.mrb[0].mxu0 %v1285
        %v1383 = vpop.f32.mrb[0].mxu0
        %v1384 = vadd.f32 0.0, %v1383
        %v1385 = vpop.f32.mrb[0].mxu0
        %1386 = vmatprep.mubr.f32.mxu0 0.0
        %1387 = vmatmul.mubr.f32.gmra.mrb[0].mxu0 %v1287
        %v1388 = vpop.f32.mrb[0].mxu0
        %v1389 = vadd.f32 0.0, %v1388
        %v1390 = vpop.f32.mrb[0].mxu0
        %1391 = vmatprep.mubr.f32.mxu0 0.0
        %1392 = vmatmul.mubr.f32.gmra.mrb[0].mxu0 %v1289
        %v1393 = vpop.f32.mrb[0].mxu0
        %v1394 = vadd.f32 0.0, %v1393
        %v1395 = vpop.f32.mrb[0].mxu0
        %1396 = vmatprep.mubr.f32.mxu0 0.0
        %1397 = vmatmul.mubr.f32.gmra.mrb[0].mxu0 %v1291
        %v1398 = vpop.f32.mrb[0].mxu0
        %v1399 = vadd.f32 0.0, %v1398
        %v1400 = vpop.f32.mrb[0].mxu0
        %1401 = vmatprep.mubr.f32.mxu0 0.0
        %1402 = vmatmul.mubr.f32.gmra.mrb[0].mxu0 %v1293
        %v1403 = vpop.f32.mrb[0].mxu0
        %v1404 = vadd.f32 0.0, %v1403
        %v1405 = vpop.f32.mrb[0].mxu0
        %1406 = vmatprep.mubr.f32.mxu0 0.0
        %1407 = vmatmul.mubr.f32.gmra.mrb[0].mxu0 %v1295
        %v1408 = vpop.f32.mrb[0].mxu0
        %v1409 = vadd.f32 0.0, %v1408
        %v1410 = vpop.f32.mrb[0].mxu0
        %1411 = vmatprep.mubr.f32.mxu0 0.0
        %1412 = vmatmul.mubr.f32.gmra.mrb[0].mxu0 %v1297
        %v1413 = vpop.f32.mrb[0].mxu0
        %v1414 = vadd.f32 0.0, %v1413
        %v1415 = vpop.f32.mrb[0].mxu0
        %1416 = vmatprep.mubr.f32.mxu0 0.0
        %1417 = vmatmul.mubr.f32.gmra.mrb[0].mxu0 %v1299
        %v1418 = vpop.f32.mrb[0].mxu0
        %v1419 = vadd.f32 0.0, %v1418
        %v1420 = vpop.f32.mrb[0].mxu0
        %1421 = vdwg.mxu0
        %v1422 = vmul.f32 %v1384, 0.125
        %v1423 = vmul.f32 %v1389, 0.125
        %v1424 = vmul.f32 %v1394, 0.125
        %v1425 = vmul.f32 %v1399, 0.125
        %v1426 = vmul.f32 %v1404, 0.125
        %v1427 = vmul.f32 %v1409, 0.125
        %v1428 = vmul.f32 %v1414, 0.125
        %v1429 = vmul.f32 %v1419, 0.125
        %v1430 = vadd.f32 %v1422, %v1018
        %v1431 = vadd.f32 %v1423, %v1018
        %v1432 = vadd.f32 %v1424, %v1018
        %v1433 = vadd.f32 %v1425, %v1018
        %v1434 = vadd.f32 %v1426, %v1018
        %v1435 = vadd.f32 %v1427, %v1018
        %v1436 = vadd.f32 %v1428, %v1018
        %v1437 = vadd.f32 %v1429, %v1018
        %v1438 = vsel %vm852, %v1430, -inf
        %1439 = vmax.xlane.f32.xlu0 %v1438
        %v1440 = vpop.xlane.xlu0 %1439
        %v1441 = vsel %vm852, %v1431, -inf
        %1442 = vmax.xlane.f32.xlu0 %v1441
        %v1443 = vpop.xlane.xlu0 %1442
        %v1444 = vsel %vm852, %v1432, -inf
        %1445 = vmax.xlane.f32.xlu0 %v1444
        %v1446 = vpop.xlane.xlu0 %1445
        %v1447 = vsel %vm852, %v1433, -inf
        %1448 = vmax.xlane.f32.xlu0 %v1447
        %v1449 = vpop.xlane.xlu0 %1448
        %v1450 = vsel %vm852, %v1434, -inf
        %1451 = vmax.xlane.f32.xlu0 %v1450
        %v1452 = vpop.xlane.xlu0 %1451
        %v1453 = vsel %vm852, %v1435, -inf
        %1454 = vmax.xlane.f32.xlu0 %v1453
        %v1455 = vpop.xlane.xlu0 %1454
        %v1456 = vsel %vm852, %v1436, -inf
        %1457 = vmax.xlane.f32.xlu0 %v1456
        %v1458 = vpop.xlane.xlu0 %1457
        %v1459 = vsel %vm852, %v1437, -inf
        %1460 = vmax.xlane.f32.xlu0 %v1459
        %v1461 = vpop.xlane.xlu0 %1460
        %v1462 = vsub.f32 %v1430, %v1440
        %v1463 = vsub.f32 %v1431, %v1443
        %v1464 = vsub.f32 %v1432, %v1446
        %v1465 = vsub.f32 %v1433, %v1449
        %v1466 = vsub.f32 %v1434, %v1452
        %v1467 = vsub.f32 %v1435, %v1455
        %v1468 = vsub.f32 %v1436, %v1458
        %v1469 = vsub.f32 %v1437, %v1461
        %v1470 = vmul.f32 %v1462, 1.442695
        %v1471 = vpow.pop %v1470
        %v1472 = vmul.f32 %v1463, 1.442695
        %v1473 = vpow.pop %v1472
        %v1474 = vmul.f32 %v1464, 1.442695
        %v1475 = vpow.pop %v1474
        %v1476 = vmul.f32 %v1465, 1.442695
        %v1477 = vpow.pop %v1476
        %v1478 = vmul.f32 %v1466, 1.442695
        %v1479 = vpow.pop %v1478
        %v1480 = vmul.f32 %v1467, 1.442695
        %v1481 = vpow.pop %v1480
        %v1482 = vmul.f32 %v1468, 1.442695
        %v1483 = vpow.pop %v1482
        %v1484 = vmul.f32 %v1469, 1.442695
        %v1485 = vpow.pop %v1484
        %v1486 = vsel %vm852, %v1471, 0.0
        %1487 = vadd.xlane.f32.xlu0 %v1486
        %v1488 = vpop.xlane.xlu0 %1487
        %v1489 = vsel %vm852, %v1473, 0.0
        %1490 = vadd.xlane.f32.xlu0 %v1489
        %v1491 = vpop.xlane.xlu0 %1490
        %v1492 = vsel %vm852, %v1475, 0.0
        %1493 = vadd.xlane.f32.xlu0 %v1492
        %v1494 = vpop.xlane.xlu0 %1493
        %v1495 = vsel %vm852, %v1477, 0.0
        %1496 = vadd.xlane.f32.xlu0 %v1495
        %v1497 = vpop.xlane.xlu0 %1496
        %v1498 = vsel %vm852, %v1479, 0.0
        %1499 = vadd.xlane.f32.xlu0 %v1498
        %v1500 = vpop.xlane.xlu0 %1499
        %v1501 = vsel %vm852, %v1481, 0.0
        %1502 = vadd.xlane.f32.xlu0 %v1501
        %v1503 = vpop.xlane.xlu0 %1502
        %v1504 = vsel %vm852, %v1483, 0.0
        %1505 = vadd.xlane.f32.xlu0 %v1504
        %v1506 = vpop.xlane.xlu0 %1505
        %v1507 = vsel %vm852, %v1485, 0.0
        %1508 = vadd.xlane.f32.xlu0 %v1507
        %v1509 = vpop.xlane.xlu0 %1508
        %1518 = vrot.lane.b32.xlu0 %v813, 64
        %v1519 = vpop.permute.xlu0 %1518
        %1520 = vrot.lane.b32.xlu0 %v818, 64
        %v1521 = vpop.permute.xlu0 %1520
        %1522 = vrot.lane.b32.xlu0 %v823, 64
        %v1523 = vpop.permute.xlu0 %1522
        %1524 = vrot.lane.b32.xlu0 %v828, 64
        %v1525 = vpop.permute.xlu0 %1524
        %1526 = vrot.lane.b32.xlu0 %v833, 64
        %v1527 = vpop.permute.xlu0 %1526
        %1528 = vrot.lane.b32.xlu0 %v838, 64
        %v1529 = vpop.permute.xlu0 %1528
        %1530 = vrot.lane.b32.xlu0 %v843, 64
        %v1531 = vpop.permute.xlu0 %1530
        %1532 = vrot.lane.b32.xlu0 %v848, 64
        %v1533 = vpop.permute.xlu0 %1532
        %v1543 = vsel %vm852, %v1471, 0
        %v1546 = vsel %vm852, %v1473, 0
        %v1549 = vsel %vm852, %v1475, 0
        %v1552 = vsel %vm852, %v1477, 0
        %v1555 = vsel %vm852, %v1479, 0
        %v1558 = vsel %vm852, %v1481, 0
        %v1561 = vsel %vm852, %v1483, 0
        %v1564 = vsel %vm852, %v1485, 0
        %1566 = vmatprep.subr.mxu0 0.0
        %1567 = vmatpush1.msra.mxu0 %v1519
        %1568 = vmatprep.subr.mxu0 0.0
        %1569 = vmatpush1.msra.mxu0 %v1521
        %1570 = vmatprep.subr.mxu0 0.0
        %1571 = vmatpush1.msra.mxu0 %v1523
        %1572 = vmatprep.subr.mxu0 0.0
        %1573 = vmatpush1.msra.mxu0 %v1525
        %1574 = vmatprep.subr.mxu0 0.0
        %1575 = vmatpush1.msra.mxu0 %v1527
        %1576 = vmatprep.subr.mxu0 0.0
        %1577 = vmatpush1.msra.mxu0 %v1529
        %1578 = vmatprep.subr.mxu0 0.0
        %1579 = vmatpush1.msra.mxu0 %v1531
        %1580 = vmatprep.subr.mxu0 0.0
        %1581 = vmatpush1.msra.mxu0 %v1533
        %1582 = vmatprep.subr.mxu0 0.0
        %1583 = vmatpush1.msra.mxu0 0.0
        %1584 = vmatprep.subr.mxu0 0.0
        %1585 = vmatpush1.msra.mxu0 0.0
        %1586 = vmatprep.subr.mxu0 0.0
        %1587 = vmatpush1.msra.mxu0 0.0
        %1588 = vmatprep.subr.mxu0 0.0
        %1589 = vmatpush1.msra.mxu0 0.0
        %1590 = vmatprep.subr.mxu0 0.0
        %1591 = vmatpush1.msra.mxu0 0.0
        %1592 = vmatprep.subr.mxu0 0.0
        %1593 = vmatpush1.msra.mxu0 0.0
        %1594 = vmatprep.subr.mxu0 0.0
        %1595 = vmatpush1.msra.mxu0 0.0
        %1596 = vmatprep.subr.mxu0 0.0
        %1597 = vmatpush1.msra.mxu0 0.0
        %1598 = vmatprep.subr.mxu0 0.0
        %1599 = vmatpush1.msra.mxu0 0.0
        %1600 = vmatprep.subr.mxu0 0.0
        %1601 = vmatpush1.msra.mxu0 0.0
        %1602 = vmatprep.subr.mxu0 0.0
        %1603 = vmatpush1.msra.mxu0 0.0
        %1604 = vmatprep.subr.mxu0 0.0
        %1605 = vmatpush1.msra.mxu0 0.0
        %1606 = vmatprep.subr.mxu0 0.0
        %1607 = vmatpush1.msra.mxu0 0.0
        %1608 = vmatprep.subr.mxu0 0.0
        %1609 = vmatpush1.msra.mxu0 0.0
        %1610 = vmatprep.subr.mxu0 0.0
        %1611 = vmatpush1.msra.mxu0 0.0
        %1612 = vmatprep.subr.mxu0 0.0
        %1613 = vmatpush1.msra.mxu0 0.0
        %1614 = vmatprep.subr.mxu0 0.0
        %1615 = vmatpush1.msra.mxu0 0.0
        %1616 = vmatprep.subr.mxu0 0.0
        %1617 = vmatpush1.msra.mxu0 0.0
        %1618 = vmatprep.subr.mxu0 0.0
        %1619 = vmatpush1.msra.mxu0 0.0
        %1620 = vmatprep.subr.mxu0 0.0
        %1621 = vmatpush1.msra.mxu0 0.0
        %1622 = vmatprep.subr.mxu0 0.0
        %1623 = vmatpush1.msra.mxu0 0.0
        %1624 = vmatprep.subr.mxu0 0.0
        %1625 = vmatpush1.msra.mxu0 0.0
        %1626 = vmatprep.subr.mxu0 0.0
        %1627 = vmatpush1.msra.mxu0 0.0
        %1628 = vmatprep.subr.mxu0 0.0
        %1629 = vmatpush1.msra.mxu0 0.0
        %1630 = vmatprep.mubr.f32.mxu0 0.0
        %1631 = vmatmul.mubr.f32.gmra.mrb[0].mxu0 %v1543
        %v1632 = vpop.f32.mrb[0].mxu0
        %v1633 = vadd.f32 0.0, %v1632
        %v1634 = vpop.f32.mrb[0].mxu0
        %1635 = vmatprep.mubr.f32.mxu0 0.0
        %1636 = vmatmul.mubr.f32.gmra.mrb[0].mxu0 %v1546
        %v1637 = vpop.f32.mrb[0].mxu0
        %v1638 = vadd.f32 0.0, %v1637
        %v1639 = vpop.f32.mrb[0].mxu0
        %1640 = vmatprep.mubr.f32.mxu0 0.0
        %1641 = vmatmul.mubr.f32.gmra.mrb[0].mxu0 %v1549
        %v1642 = vpop.f32.mrb[0].mxu0
        %v1643 = vadd.f32 0.0, %v1642
        %v1644 = vpop.f32.mrb[0].mxu0
        %1645 = vmatprep.mubr.f32.mxu0 0.0
        %1646 = vmatmul.mubr.f32.gmra.mrb[0].mxu0 %v1552
        %v1647 = vpop.f32.mrb[0].mxu0
        %v1648 = vadd.f32 0.0, %v1647
        %v1649 = vpop.f32.mrb[0].mxu0
        %1650 = vmatprep.mubr.f32.mxu0 0.0
        %1651 = vmatmul.mubr.f32.gmra.mrb[0].mxu0 %v1555
        %v1652 = vpop.f32.mrb[0].mxu0
        %v1653 = vadd.f32 0.0, %v1652
        %v1654 = vpop.f32.mrb[0].mxu0
        %1655 = vmatprep.mubr.f32.mxu0 0.0
        %1656 = vmatmul.mubr.f32.gmra.mrb[0].mxu0 %v1558
        %v1657 = vpop.f32.mrb[0].mxu0
        %v1658 = vadd.f32 0.0, %v1657
        %v1659 = vpop.f32.mrb[0].mxu0
        %1660 = vmatprep.mubr.f32.mxu0 0.0
        %1661 = vmatmul.mubr.f32.gmra.mrb[0].mxu0 %v1561
        %v1662 = vpop.f32.mrb[0].mxu0
        %v1663 = vadd.f32 0.0, %v1662
        %v1664 = vpop.f32.mrb[0].mxu0
        %1665 = vmatprep.mubr.f32.mxu0 0.0
        %1666 = vmatmul.mubr.f32.gmra.mrb[0].mxu0 %v1564
        %v1667 = vpop.f32.mrb[0].mxu0
        %v1668 = vadd.f32 0.0, %v1667
        %v1669 = vpop.f32.mrb[0].mxu0
        %1670 = vdwg.mxu0
        %v1671 = vrcp.pop %v1488
        %v1672 = vmul.f32 1.0, %v1671
        %v1673 = vrcp.pop %v1491
        %v1674 = vmul.f32 1.0, %v1673
        %v1675 = vrcp.pop %v1494
        %v1676 = vmul.f32 1.0, %v1675
        %v1677 = vrcp.pop %v1497
        %v1678 = vmul.f32 1.0, %v1677
        %v1679 = vrcp.pop %v1500
        %v1680 = vmul.f32 1.0, %v1679
        %v1681 = vrcp.pop %v1503
        %v1682 = vmul.f32 1.0, %v1681
        %v1683 = vrcp.pop %v1506
        %v1684 = vmul.f32 1.0, %v1683
        %v1685 = vrcp.pop %v1509
        %v1686 = vmul.f32 1.0, %v1685
        %v1687 = vmul.f32 %v1633, %v1672
        %v1688 = vmul.f32 %v1638, %v1674
        %v1689 = vmul.f32 %v1643, %v1676
        %v1690 = vmul.f32 %v1648, %v1678
        %v1691 = vmul.f32 %v1653, %v1680
        %v1692 = vmul.f32 %v1658, %v1682
        %v1693 = vmul.f32 %v1663, %v1684
        %v1694 = vmul.f32 %v1668, %v1686
        %1703 = vrot.lane.b32.xlu0 %v1687, 64
        %v1704 = vpop.permute.xlu0 %1703
        %1705 = vrot.lane.b32.xlu0 %v1688, 64
        %v1706 = vpop.permute.xlu0 %1705
        %1707 = vrot.lane.b32.xlu0 %v1689, 64
        %v1708 = vpop.permute.xlu0 %1707
        %1709 = vrot.lane.b32.xlu0 %v1690, 64
        %v1710 = vpop.permute.xlu0 %1709
        %1711 = vrot.lane.b32.xlu0 %v1691, 64
        %v1712 = vpop.permute.xlu0 %1711
        %1713 = vrot.lane.b32.xlu0 %v1692, 64
        %v1714 = vpop.permute.xlu0 %1713
        %1715 = vrot.lane.b32.xlu0 %v1693, 64
        %v1716 = vpop.permute.xlu0 %1715
        %1717 = vrot.lane.b32.xlu0 %v1694, 64
        %v1718 = vpop.permute.xlu0 %1717
        %v1727 = vsel %vm852, %v1245, %v1704
        %v1728 = vsel %vm852, %v1246, %v1706
        %v1729 = vsel %vm852, %v1247, %v1708
        %v1730 = vsel %vm852, %v1248, %v1710
        %v1731 = vsel %vm852, %v1249, %v1712
        %v1732 = vsel %vm852, %v1250, %v1714
        %v1733 = vsel %vm852, %v1251, %v1716
        %v1734 = vsel %vm852, %v1252, %v1718
        %1735 = vst [vmem:[%s446] sm:$0xff] %v1727
        %1736 = vst [vmem:[%s446 + $0x8] sm:$0xff] %v1728
        %1737 = vst [vmem:[%s446 + $0x10] sm:$0xff] %v1729
        %1738 = vst [vmem:[%s446 + $0x18] sm:$0xff] %v1730
        %1739 = vst [vmem:[%s446 + $0x20] sm:$0xff] %v1731
        %1740 = vst [vmem:[%s446 + $0x28] sm:$0xff] %v1732
        %1741 = vst [vmem:[%s446 + $0x30] sm:$0xff] %v1733
        %1742 = vst [vmem:[%s446 + $0x38] sm:$0xff] %v1734
        %s1743 = sand.u32 %s257, 1
        %s1744 = scalar_lea.sflag [#allocation4], %s1743
        %s1745 = sand.u32 %s257, 1
        %s1746 = smul.addr %s1745, 64
        %s1747 = scalar_lea.vmem [#allocation10], %s1746
        // Predicated region
        $region69: #{tpu_custom_call.1} parent=51 // pred_check
          %p1748 = pneg %p267
        $region70: #{tpu_custom_call.1} parent=51 // pred_check_branch
          %1750 = sbr.rel (%p1748) target = $region72
        $region71: #{tpu_custom_call.1} parent=51 // pred_region
          %s1752 = ssub.s32 1024, 1024
          %1753 = vsyncadd %s1744, %s1752
          %s1754 = smul.addr %s31, 8
          %s1755 = sadd.s32 %s32, %s1754
          %s1756 = smul.addr %s1755, 128
          %s1757 = scalar_lea.hbm %s8, %s1756
          %s1758 = sshll.u32 %s1747, 4
          %s1759 = int_to_ptr.vmem [resolvable:$true] %s1758
          %1764 = dma.vmem_to_hbm [thread:$0]  %s1759, 1024, %s1757, %s1744, 128, 128, 8
        $region72: #{tpu_custom_call.1} parent=51 // pred_fallthru
          _
      $region52: #{tpu_custom_call.1} parent=5 // pred_fallthru
        _
      %p1765 = scmp.le.s32.totalorder 2, %s22
      // Predicated region
      $region73: #{tpu_custom_call.1} parent=5 // pred_check
        %p1766 = pneg %p1765
      $region74: #{tpu_custom_call.1} parent=5 // pred_check_branch
        %1768 = sbr.rel (%p1766) target = $region76
      $region75: #{tpu_custom_call.1} parent=5 // pred_region
        %s1769 = ssub.s32 %s22, 2
        // Predicated region
        $region77: #{tpu_custom_call.1} parent=75 // pred_check
          %p1770 = pneg %p273
        $region78: #{tpu_custom_call.1} parent=75 // pred_check_branch
          %1772 = sbr.rel (%p1770) target = $region80
        $region79: #{tpu_custom_call.1} parent=75 // pred_region
          %s1773 = sand.u32 %s258, 1
          %s1774 = scalar_lea.sflag [#allocation4], %s1773
          %s1775 = sand.u32 %s258, 1
          %s1776 = smul.addr %s1775, 64
          %s1777 = scalar_lea.vmem [#allocation10], %s1776
          %1778 = dma.done %s1774, 1024
        $region80: #{tpu_custom_call.1} parent=75 // pred_fallthru
          _
      $region76: #{tpu_custom_call.1} parent=5 // pred_fallthru
        _
    $region6: #{tpu_custom_call.1} parent=1 // loop_footer
      %s26 = sadd.s32 1, %s22
    $region7: #{tpu_custom_call.1} parent=1 // loop_footer_branch
      %21 = sbr.rel target = $region3
    $region8: #{tpu_custom_call.1} parent=1 // loop_exit
      _
    %1779 = vsyncpa [#allocation3], 1
    %s1780 = scalar_lea.sflag [#allocation3], 1
    %1781 = vsyncpa %s1780, 1
    %1782 = vsyncpa [#allocation6], 1
    %1783 = vsyncpa [#allocation9], 1
    %1784 = vsyncpa [#allocation4], 1
    %s1785 = scalar_lea.sflag [#allocation4], 1
    %1786 = vsyncpa %s1785, 1

</llo_original>
